<compile_context>
chip_gen: v7x
topology: tpu7x:2x2x1
jax: 0.10.0
libtpu: 0.0.40
codegen_flags: <defaults>
</compile_context>

<pallas_src>
import jax
import jax.numpy as jnp
from jax import lax
from jax.experimental import pallas as pl
from jax.experimental.pallas import tpu as pltpu


# --------------------------------------------------------------------------------
# Kernel A: fused softmax(dim=-1) + errors, class-major output, gridded (B, H-tiles)
# --------------------------------------------------------------------------------
def _softmax_err_kernel(x_ref, lab_ref, err_ref):
    x = x_ref[0].astype(jnp.float32)                      # [C, Th, W] logits
    m = jnp.max(x, axis=-1, keepdims=True)                # softmax over W (dim=-1),
    e = jnp.exp(x - m)                                    #   exactly like the module
    inv = pl.reciprocal(jnp.sum(e, axis=-1, keepdims=True))   # one recip per row
    probas = e * inv
    lab = lab_ref[0]                                      # [Th, W] int32
    C = x.shape[0]
    cls = lax.broadcasted_iota(jnp.int32, (C,) + lab.shape, 0)
    onehot = (lab[None, :, :] == cls).astype(jnp.float32)
    err = jnp.abs(onehot - probas)                        # [C, Th, W], one VPU pass
    err_ref[...] = err.reshape(err_ref.shape)             # [C, 1, Th, W]


def _pick_h_tile(C, H, W, max_bytes=4 << 20):
    # largest Th dividing H with a legal (Th, W) block (Th % 8 == 0 or Th == H)
    # and an err/logits block under ~4 MiB (double-buffered footprint < 32 MiB).
    legal = [t for t in range(1, H + 1) if H % t == 0 and (t % 8 == 0 or t == H)]
    fitting = [t for t in legal if C * t * W * 4 <= max_bytes]
    # TODO(synk): ragged H with no 8-aligned divisor falls back to whole-H blocks,
    # which can exceed VMEM for very large H*W.
    return max(fitting) if fitting else min(legal)


def _softmax_and_errors(cls_score, label):
    B, C, H, W = cls_score.shape
    Th = _pick_h_tile(C, H, W)
    NH = H // Th
    # NOTE: store lane dim is W; typical seg crops (W multiple of 128) give dense
    # vst stores.  The tiny self-test shape uses full-dim blocks, which is legal.
    err = pl.pallas_call(
        _softmax_err_kernel,
        out_shape=jax.ShapeDtypeStruct((C, B, H, W), jnp.float32),
        grid=(B, NH),
        in_specs=[
            pl.BlockSpec((1, C, Th, W), lambda b, t: (b, 0, t, 0)),
            pl.BlockSpec((1, Th, W), lambda b, t: (b, t, 0)),
        ],
        out_specs=pl.BlockSpec((C, 1, Th, W), lambda b, t: (0, b, t, 0)),
        compiler_params=pltpu.CompilerParams(
            dimension_semantics=("parallel", "parallel"),
            vmem_limit_bytes=32 * 1024 * 1024),
    )(cls_score, label.astype(jnp.int32))
    return err.reshape(C, B * H * W)       # contiguous reshape, column p = b*H*W + h*W + w


# --------------------------------------------------------------------------------
# Kernel B: lovasz_grad + per-class dots over descending tiles, single serial sweep
# --------------------------------------------------------------------------------
_E = 128   # tri edge / chunk width: one MXU-friendly tile on v5e/v6e/v7x


def _lovasz_kernel(err_ref, fg_ref, gts_ref, tri_ref, out_ref, carry_ref, acc_ref):
    s = pl.program_id(0)                    # descending tile index
    nt = pl.num_programs(0)
    C, K, E = err_ref.shape
    Tp = K * E

    @pl.when(s == 0)
    def _init():
        carry_ref[...] = jnp.zeros_like(carry_ref)
        acc_ref[...] = jnp.zeros_like(acc_ref)

    err = err_ref[...]                                     # [C,K,E] ascending-sorted errors
    fg = fg_ref[...].astype(jnp.float32)                   # [C,K,E] 0/1
    gts3 = gts_ref[...][:, :, None]                        # [C,1,1] per-class totals

    # within-chunk reverse-inclusive cumsum: one [C*K,E]x[E,E] bf16 tri matmul
    rc = jnp.dot(fg.reshape(C * K, E).astype(jnp.bfloat16), tri_ref[...],
                 preferred_element_type=jnp.float32).reshape(C, K, E)
    # strict chunk-suffix fixup on the VPU: suf[c,k] = sum_{k'>k} tot[c,k']
    tot = jnp.sum(fg, axis=-1)                             # [C,K]
    kk_i = lax.broadcasted_iota(jnp.int32, (K, K), 0)
    kk_j = lax.broadcasted_iota(jnp.int32, (K, K), 1)
    mask = (kk_i > kk_j).astype(jnp.float32)               # [K,K]
    suf = jnp.sum(tot[:, :, None] * mask[None, :, :], axis=1)   # [C,K]

    # global inclusive cumsum(fg) in DESCENDING error order at every element
    cum_fg = carry_ref[...][:, :, None] + rc + suf[:, :, None]

    # 1-based descending position (tiles visited in reverse, lanes right-to-left)
    koff = lax.broadcasted_iota(jnp.int32, (C, K, E), 1)
    eoff = lax.broadcasted_iota(jnp.int32, (C, K, E), 2)
    pos1 = ((s + 1) * Tp - (koff * E + eoff)).astype(jnp.float32)

    # lovasz_grad = jaccard(p) - jaccard(p-1), both from inclusive/exclusive cumsums
    jac = 1.0 - (gts3 - cum_fg) / (gts3 + pos1 - cum_fg)
    cum_ex = cum_fg - fg
    prev = jnp.where(pos1 <= 1.0, 0.0,
                     1.0 - (gts3 - cum_ex) / (gts3 + (pos1 - 1.0) - cum_ex))
    grad = jac - prev

    acc_ref[...] += jnp.sum(jnp.sum(err * grad, axis=-1), axis=-1, keepdims=True)
    carry_ref[...] += jnp.sum(tot, axis=-1, keepdims=True)

    @pl.when(s == nt - 1)
    def _final():
        present = (gts_ref[...] > 0.0).astype(jnp.float32)   # classes='present'
        num = jnp.sum(acc_ref[...] * present)
        den = jnp.sum(present)
        # TODO(synk): den == 0 (no class present at all) yields NaN, matching the
        # undefined reference behaviour (mean of an empty list of class losses).
        out_ref[...] = (num / den).reshape(1, 1)


def _pick_p_tile(P):
    # Tp = K*_E with K a multiple of 32 (int8-friendly sublane tiling).  Large tiles
    # keep the serial sweep short (per-grid-step overhead ~0.35us would otherwise
    # dominate the small HBM traffic of this kernel).
    tp = 4096 if P <= 4096 else 8192
    p_pad = -(-P // tp) * tp
    return tp, p_pad


def _lovasz_flat(err_sorted, fg_sorted, gts, Tp):
    C, P_pad = err_sorted.shape
    K = Tp // _E
    NT = P_pad // Tp
    NC = P_pad // _E
    idx = jnp.arange(_E, dtype=jnp.int32)
    tri = (idx[:, None] >= idx[None, :]).astype(jnp.bfloat16)   # reverse-cumsum tri
    err3 = err_sorted.reshape(C, NC, _E)     # free reshapes (contiguous)
    fg3 = fg_sorted.reshape(C, NC, _E)
    # TODO(synk): optional v7x-only class-parallel split of this sweep across the
    # two TensorCores is not implemented (single serial 'arbitrary' sweep).
    out = pl.pallas_call(
        _lovasz_kernel,
        out_shape=jax.ShapeDtypeStruct((1, 1), jnp.float32),
        grid=(NT,),
        in_specs=[
            pl.BlockSpec((C, K, _E), lambda s: (0, NT - 1 - s, 0)),   # reverse walk
            pl.BlockSpec((C, K, _E), lambda s: (0, NT - 1 - s, 0)),
            pl.BlockSpec((C, 1), lambda s: (0, 0)),                   # gts, fetched once
            pl.BlockSpec((_E, _E), lambda s: (0, 0)),                 # tri, fetched once
        ],
        out_specs=pl.BlockSpec((1, 1), lambda s: (0, 0)),
        scratch_shapes=[
            pltpu.VMEM((C, 1), jnp.float32),   # running cumsum(fg) carry
            pltpu.VMEM((C, 1), jnp.float32),   # per-class dot accumulator
        ],
        compiler_params=pltpu.CompilerParams(
            dimension_semantics=("arbitrary",)),
    )(err3, fg3, gts, tri)
    return out[0, 0]


# --------------------------------------------------------------------------------
# LovaszLoss forward (use_softmax=True, ignore_index=None, reduction='mean')
# --------------------------------------------------------------------------------
@jax.jit
def _lovasz_forward(cls_score, label, loss_weight):
    B, C, H, W = cls_score.shape
    P = B * H * W
    err_cp = _softmax_and_errors(cls_score, label)                       # [C, P] f32
    lab_flat = label.reshape(-1).astype(jnp.int32)
    fg_cp = (lab_flat[None, :] ==
             jnp.arange(C, dtype=jnp.int32)[:, None]).astype(jnp.int8)   # [C, P] 0/1
    gts = jnp.sum(fg_cp, axis=1, keepdims=True, dtype=jnp.float32)       # [C, 1]
    Tp, P_pad = _pick_p_tile(P)
    if P_pad > P:
        # Zero padding is exact: padded elements (err=0, fg=0) sort to the low-error
        # end, contribute nothing to the dots and do not change gts.
        err_cp = jnp.pad(err_cp, ((0, 0), (0, P_pad - P)))
        fg_cp = jnp.pad(fg_cp, ((0, 0), (0, P_pad - P)))
    # TODO(synk): torch.sort (per-class, descending) has no practical Pallas TPU
    # equivalent; a single ASCENDING stable XLA sort is used and kernel B walks the
    # tiles in reverse (tie ordering may differ marginally from torch.sort).
    err_s, fg_s = lax.sort_key_val(err_cp, fg_cp, dimension=-1)
    loss = _lovasz_flat(err_s, fg_s, gts, Tp)
    return loss_weight * loss


def lovasz_loss_pallas(cls_score, label, loss_weight=1.0):
    return _lovasz_forward(cls_score, label, jnp.float32(loss_weight))


# --------------------------------------------------------------------------------
# pure-JAX reference (mirrors the PyTorch code: softmax over dim=-1, then lovasz)
# --------------------------------------------------------------------------------
def lovasz_loss_ref(cls_score, label, loss_weight=1.0):
    probas = jax.nn.softmax(cls_score.astype(jnp.float32), axis=-1)
    B, C, H, W = probas.shape
    pf = jnp.transpose(probas, (0, 2, 3, 1)).reshape(-1, C)
    lf = label.reshape(-1)
    losses = []
    for c in range(C):
        fg = (lf == c).astype(jnp.float32)
        if float(jnp.sum(fg)) == 0.0:       # classes='present'
            continue
        errors = jnp.abs(fg - pf[:, c])
        order = jnp.argsort(-errors)
        es = errors[order]
        fs = fg[order]
        gts = jnp.sum(fs)
        inter = gts - jnp.cumsum(fs)
        union = gts + jnp.cumsum(1.0 - fs)
        jac = 1.0 - inter / union
        jac = jnp.concatenate([jac[:1], jac[1:] - jac[:-1]])
        losses.append(jnp.dot(es, jac))
    return loss_weight * jnp.mean(jnp.stack(losses))


if __name__ == "__main__":
    key = jax.random.PRNGKey(0)
    k1, k2 = jax.random.split(key)
    B, C, H, W = 2, 4, 16, 16
    cls_score = jax.random.normal(k1, (B, C, H, W), dtype=jnp.float32)
    label = jax.random.randint(k2, (B, H, W), 0, C, dtype=jnp.int32)

    loss = lovasz_loss_pallas(cls_score, label, loss_weight=1.0)
    loss = jax.block_until_ready(loss)

    ref = lovasz_loss_ref(cls_score, label, loss_weight=1.0)
    assert abs(float(loss) - float(ref)) < 1e-4, (float(loss), float(ref))
    print("KERNEL_OK")
</pallas_src>

<mosaic_0001>
module attributes {stable_mosaic.version = 11 : i64} {
  func.func @_softmax_err_kernel(%arg0: i32, %arg1: i32, %arg2: memref<1x4x16x16xf32, #tpu.memory_space<vmem>>, %arg3: memref<1x16x16xi32, #tpu.memory_space<vmem>>, %arg4: memref<4x1x16x16xf32, #tpu.memory_space<vmem>>) attributes {dimension_semantics = [#tpu.dimension_semantics<parallel>, #tpu.dimension_semantics<parallel>], iteration_bounds = array<i64: 2, 1>, scalar_prefetch = 0 : i64, scratch_operands = 0 : i64, tpu.core_type = #tpu.core_type<tc>, window_params = [{transform_indices = @transform_0, window_bounds = array<i64: 1, 4, 16, 16>}, {transform_indices = @transform_1, window_bounds = array<i64: 1, 16, 16>}, {transform_indices = @transform_2, window_bounds = array<i64: 4, 1, 16, 16>}]} {
    %c0 = arith.constant 0 : index
    %c0_0 = arith.constant 0 : index
    %c0_1 = arith.constant 0 : index
    %c0_2 = arith.constant 0 : index
    %0 = vector.load %arg2[%c0, %c0_0, %c0_1, %c0_2] : memref<1x4x16x16xf32, #tpu.memory_space<vmem>>, vector<1x4x16x16xf32>
    %1 = vector.shape_cast %0 : vector<1x4x16x16xf32> to vector<4x16x16xf32>
    %cst = arith.constant dense<0xFF800000> : vector<4x16xf32>
    %2 = vector.multi_reduction <maximumf>, %1, %cst [2] : vector<4x16x16xf32> to vector<4x16xf32>
    %3 = vector.shape_cast %2 : vector<4x16xf32> to vector<4x16x1xf32>
    %4 = vector.broadcast %3 : vector<4x16x1xf32> to vector<4x16x16xf32>
    %5 = arith.subf %1, %4 : vector<4x16x16xf32>
    %6 = math.exp %5 : vector<4x16x16xf32>
    %cst_3 = arith.constant dense<0.000000e+00> : vector<4x16xf32>
    %7 = vector.multi_reduction <add>, %6, %cst_3 [2] : vector<4x16x16xf32> to vector<4x16xf32>
    %8 = vector.shape_cast %7 : vector<4x16xf32> to vector<4x16x1xf32>
    %9 = tpu.reciprocal %8 : vector<4x16x1xf32> -> vector<4x16x1xf32>
    %10 = vector.broadcast %9 : vector<4x16x1xf32> to vector<4x16x16xf32>
    %11 = arith.mulf %6, %10 : vector<4x16x16xf32>
    %c0_4 = arith.constant 0 : index
    %c0_5 = arith.constant 0 : index
    %c0_6 = arith.constant 0 : index
    %12 = vector.load %arg3[%c0_4, %c0_5, %c0_6] : memref<1x16x16xi32, #tpu.memory_space<vmem>>, vector<1x16x16xi32>
    %13 = vector.shape_cast %12 : vector<1x16x16xi32> to vector<16x16xi32>
    %14 = tpu.iota {dimensions = array<i32: 0>} : vector<4x16x16xi32>
    %15 = vector.shape_cast %13 : vector<16x16xi32> to vector<1x16x16xi32>
    %16 = vector.broadcast %15 : vector<1x16x16xi32> to vector<4x16x16xi32>
    %17 = arith.cmpi eq, %16, %14 : vector<4x16x16xi32>
    %18 = arith.extui %17 : vector<4x16x16xi1> to vector<4x16x16xi32>
    %19 = arith.sitofp %18 : vector<4x16x16xi32> to vector<4x16x16xf32>
    %20 = arith.subf %19, %11 : vector<4x16x16xf32>
    %21 = math.absf %20 : vector<4x16x16xf32>
    %22 = vector.shape_cast %21 : vector<4x16x16xf32> to vector<4x1x16x16xf32>
    %c0_7 = arith.constant 0 : index
    %c0_8 = arith.constant 0 : index
    %c0_9 = arith.constant 0 : index
    %c0_10 = arith.constant 0 : index
    %23 = vector.load %arg4[%c0_7, %c0_8, %c0_9, %c0_10] : memref<4x1x16x16xf32, #tpu.memory_space<vmem>>, vector<4x1x16x16xf32>
    tpu.vector_store %arg4[%c0_7, %c0_8, %c0_9, %c0_10], %22 {strides = array<i32>} : memref<4x1x16x16xf32, #tpu.memory_space<vmem>>, vector<4x1x16x16xf32>,
    return
  }
  func.func @transform_0(%arg0: i32, %arg1: i32) -> (i32, i32, i32, i32) {
    %c0_i32 = arith.constant 0 : i32
    %c0_i32_0 = arith.constant 0 : i32
    %c0_i32_1 = arith.constant 0 : i32
    return %arg0, %c0_i32, %arg1, %c0_i32_0 : i32, i32, i32, i32
  }
  func.func @transform_1(%arg0: i32, %arg1: i32) -> (i32, i32, i32) {
    %c0_i32 = arith.constant 0 : i32
    %c0_i32_0 = arith.constant 0 : i32
    return %arg0, %arg1, %c0_i32 : i32, i32, i32
  }
  func.func @transform_2(%arg0: i32, %arg1: i32) -> (i32, i32, i32, i32) {
    %c0_i32 = arith.constant 0 : i32
    %c0_i32_0 = arith.constant 0 : i32
    %c0_i32_1 = arith.constant 0 : i32
    return %c0_i32, %arg0, %arg1, %c0_i32_0 : i32, i32, i32, i32
  }
}

module attributes {stable_mosaic.version = 11 : i64} {
  func.func @_lovasz_kernel(%arg0: i32, %arg1: memref<4x32x128xf32, #tpu.memory_space<vmem>>, %arg2: memref<4x32x128xi8, #tpu.memory_space<vmem>>, %arg3: memref<4x1xf32, #tpu.memory_space<vmem>>, %arg4: memref<128x128xbf16, #tpu.memory_space<vmem>>, %arg5: memref<1x1xf32, #tpu.memory_space<vmem>>, %arg6: memref<4x1xf32, #tpu.memory_space<vmem>>, %arg7: memref<4x1xf32, #tpu.memory_space<vmem>>) attributes {dimension_semantics = [#tpu.dimension_semantics<arbitrary>], iteration_bounds = array<i64: 1>, scalar_prefetch = 0 : i64, scratch_operands = 2 : i64, tpu.core_type = #tpu.core_type<tc>, window_params = [{transform_indices = @transform_0, window_bounds = array<i64: 4, 32, 128>}, {transform_indices = @transform_1, window_bounds = array<i64: 4, 32, 128>}, {pipeline_mode = #tpu.pipeline_mode<synchronous>, transform_indices = @transform_2, window_bounds = array<i64: 4, 1>}, {pipeline_mode = #tpu.pipeline_mode<synchronous>, transform_indices = @transform_3, window_bounds = array<i64: 128, 128>}, {pipeline_mode = #tpu.pipeline_mode<synchronous>, transform_indices = @transform_4, window_bounds = array<i64: 1, 1>}]} {
    %c0_i32 = arith.constant 0 : i32
    %0 = arith.cmpi eq, %arg0, %c0_i32 : i32
    %1 = arith.extui %0 : i1 to i32
    %c0_i32_0 = arith.constant 0 : i32
    %2 = arith.cmpi ne, %1, %c0_i32_0 : i32
    scf.if %2 {
      %cst_32 = arith.constant 0.000000e+00 : f32
      %81 = vector.broadcast %cst_32 : f32 to vector<4x1xf32>
      %c0_33 = arith.constant 0 : index
      %c0_34 = arith.constant 0 : index
      %82 = vector.load %arg6[%c0_33, %c0_34] : memref<4x1xf32, #tpu.memory_space<vmem>>, vector<4x1xf32>
      tpu.vector_store %arg6[%c0_33, %c0_34], %81 {strides = array<i32>} : memref<4x1xf32, #tpu.memory_space<vmem>>, vector<4x1xf32>,
      %cst_35 = arith.constant 0.000000e+00 : f32
      %83 = vector.broadcast %cst_35 : f32 to vector<4x1xf32>
      %c0_36 = arith.constant 0 : index
      %c0_37 = arith.constant 0 : index
      %84 = vector.load %arg7[%c0_36, %c0_37] : memref<4x1xf32, #tpu.memory_space<vmem>>, vector<4x1xf32>
      tpu.vector_store %arg7[%c0_36, %c0_37], %83 {strides = array<i32>} : memref<4x1xf32, #tpu.memory_space<vmem>>, vector<4x1xf32>,
    } else {
    }
    %c0 = arith.constant 0 : index
    %c0_1 = arith.constant 0 : index
    %c0_2 = arith.constant 0 : index
    %3 = vector.load %arg1[%c0, %c0_1, %c0_2] : memref<4x32x128xf32, #tpu.memory_space<vmem>>, vector<4x32x128xf32>
    %c0_3 = arith.constant 0 : index
    %c0_4 = arith.constant 0 : index
    %c0_5 = arith.constant 0 : index
    %4 = vector.load %arg2[%c0_3, %c0_4, %c0_5] : memref<4x32x128xi8, #tpu.memory_space<vmem>>, vector<4x32x128xi8>
    %5 = arith.sitofp %4 : vector<4x32x128xi8> to vector<4x32x128xf32>
    %c0_6 = arith.constant 0 : index
    %c0_7 = arith.constant 0 : index
    %6 = vector.load %arg3[%c0_6, %c0_7] : memref<4x1xf32, #tpu.memory_space<vmem>>, vector<4x1xf32>
    %7 = vector.shape_cast %6 : vector<4x1xf32> to vector<4x1x1xf32>
    %8 = vector.shape_cast %5 : vector<4x32x128xf32> to vector<128x128xf32>
    %9 = arith.truncf %8 : vector<128x128xf32> to vector<128x128xbf16>
    %c0_8 = arith.constant 0 : index
    %c0_9 = arith.constant 0 : index
    %10 = vector.load %arg4[%c0_8, %c0_9] : memref<128x128xbf16, #tpu.memory_space<vmem>>, vector<128x128xbf16>
    %cst = arith.constant dense<0.000000e+00> : vector<128x128xf32>
    %11 = tpu.matmul %9, %10, %cst {dimension_numbers = #tpu.dot_dimension_numbers<[1], [0], [0], [1], [0, 0, 1, 1], [], []>} : vector<128x128xbf16>, vector<128x128xbf16>, vector<128x128xf32> -> vector<128x128xf32>
    %12 = vector.shape_cast %11 : vector<128x128xf32> to vector<4x32x128xf32>
    %cst_10 = arith.constant dense<0.000000e+00> : vector<4x32xf32>
    %13 = vector.multi_reduction <add>, %5, %cst_10 [2] : vector<4x32x128xf32> to vector<4x32xf32>
    %14 = tpu.iota {dimensions = array<i32: 0>} : vector<32x32xi32>
    %15 = tpu.iota {dimensions = array<i32: 1>} : vector<32x32xi32>
    %16 = arith.cmpi sgt, %14, %15 : vector<32x32xi32>
    %17 = arith.extui %16 : vector<32x32xi1> to vector<32x32xi32>
    %18 = arith.sitofp %17 : vector<32x32xi32> to vector<32x32xf32>
    %19 = vector.shape_cast %13 : vector<4x32xf32> to vector<4x32x1xf32>
    %20 = vector.shape_cast %18 : vector<32x32xf32> to vector<1x32x32xf32>
    %21 = vector.broadcast %19 : vector<4x32x1xf32> to vector<4x32x32xf32>
    %22 = vector.broadcast %20 : vector<1x32x32xf32> to vector<4x32x32xf32>
    %23 = arith.mulf %21, %22 : vector<4x32x32xf32>
    %cst_11 = arith.constant dense<0.000000e+00> : vector<4x32xf32>
    %24 = vector.multi_reduction <add>, %23, %cst_11 [1] : vector<4x32x32xf32> to vector<4x32xf32>
    %c0_12 = arith.constant 0 : index
    %c0_13 = arith.constant 0 : index
    %25 = vector.load %arg6[%c0_12, %c0_13] : memref<4x1xf32, #tpu.memory_space<vmem>>, vector<4x1xf32>
    %26 = vector.shape_cast %25 : vector<4x1xf32> to vector<4x1x1xf32>
    %27 = vector.broadcast %26 : vector<4x1x1xf32> to vector<4x32x128xf32>
    %28 = arith.addf %27, %12 : vector<4x32x128xf32>
    %29 = vector.shape_cast %24 : vector<4x32xf32> to vector<4x32x1xf32>
    %30 = vector.broadcast %29 : vector<4x32x1xf32> to vector<4x32x128xf32>
    %31 = arith.addf %28, %30 : vector<4x32x128xf32>
    %32 = tpu.iota {dimensions = array<i32: 1>} : vector<4x32x128xi32>
    %33 = tpu.iota {dimensions = array<i32: 2>} : vector<4x32x128xi32>
    %c1_i32 = arith.constant 1 : i32
    %34 = arith.addi %arg0, %c1_i32 : i32
    %c4096_i32 = arith.constant 4096 : i32
    %35 = arith.muli %34, %c4096_i32 : i32
    %c128_i32 = arith.constant 128 : i32
    %36 = vector.broadcast %c128_i32 : i32 to vector<4x32x128xi32>
    %37 = arith.muli %32, %36 : vector<4x32x128xi32>
    %38 = arith.addi %37, %33 : vector<4x32x128xi32>
    %39 = vector.broadcast %35 : i32 to vector<4x32x128xi32>
    %40 = arith.subi %39, %38 : vector<4x32x128xi32>
    %41 = arith.sitofp %40 : vector<4x32x128xi32> to vector<4x32x128xf32>
    %42 = vector.broadcast %7 : vector<4x1x1xf32> to vector<4x32x128xf32>
    %43 = arith.subf %42, %31 : vector<4x32x128xf32>
    %44 = vector.broadcast %7 : vector<4x1x1xf32> to vector<4x32x128xf32>
    %45 = arith.addf %44, %41 : vector<4x32x128xf32>
    %46 = arith.subf %45, %31 : vector<4x32x128xf32>
    %47 = arith.divf %43, %46 : vector<4x32x128xf32>
    %cst_14 = arith.constant 1.000000e+00 : f32
    %48 = vector.broadcast %cst_14 : f32 to vector<4x32x128xf32>
    %49 = arith.subf %48, %47 : vector<4x32x128xf32>
    %50 = arith.subf %31, %5 : vector<4x32x128xf32>
    %cst_15 = arith.constant 1.000000e+00 : f32
    %51 = vector.broadcast %cst_15 : f32 to vector<4x32x128xf32>
    %52 = arith.cmpf ole, %41, %51 : vector<4x32x128xf32>
    %53 = vector.broadcast %7 : vector<4x1x1xf32> to vector<4x32x128xf32>
    %54 = arith.subf %53, %50 : vector<4x32x128xf32>
    %cst_16 = arith.constant 1.000000e+00 : f32
    %55 = vector.broadcast %cst_16 : f32 to vector<4x32x128xf32>
    %56 = arith.subf %41, %55 : vector<4x32x128xf32>
    %57 = vector.broadcast %7 : vector<4x1x1xf32> to vector<4x32x128xf32>
    %58 = arith.addf %57, %56 : vector<4x32x128xf32>
    %59 = arith.subf %58, %50 : vector<4x32x128xf32>
    %60 = arith.divf %54, %59 : vector<4x32x128xf32>
    %cst_17 = arith.constant 1.000000e+00 : f32
    %61 = vector.broadcast %cst_17 : f32 to vector<4x32x128xf32>
    %62 = arith.subf %61, %60 : vector<4x32x128xf32>
    %cst_18 = arith.constant 0.000000e+00 : f32
    %63 = vector.broadcast %cst_18 : f32 to vector<4x32x128xf32>
    %64 = arith.select %52, %63, %62 : vector<4x32x128xi1>, vector<4x32x128xf32>
    %65 = arith.subf %49, %64 : vector<4x32x128xf32>
    %c0_19 = arith.constant 0 : index
    %c0_20 = arith.constant 0 : index
    %66 = vector.load %arg7[%c0_19, %c0_20] : memref<4x1xf32, #tpu.memory_space<vmem>>, vector<4x1xf32>
    %67 = arith.mulf %3, %65 : vector<4x32x128xf32>
    %cst_21 = arith.constant dense<0.000000e+00> : vector<4x32xf32>
    %68 = vector.multi_reduction <add>, %67, %cst_21 [2] : vector<4x32x128xf32> to vector<4x32xf32>
    %cst_22 = arith.constant dense<0.000000e+00> : vector<4xf32>
    %69 = vector.multi_reduction <add>, %68, %cst_22 [1] : vector<4x32xf32> to vector<4xf32>
    %70 = vector.shape_cast %69 : vector<4xf32> to vector<4x1xf32>
    %71 = arith.addf %66, %70 : vector<4x1xf32>
    %c0_23 = arith.constant 0 : index
    %c0_24 = arith.constant 0 : index
    %72 = vector.load %arg7[%c0_23, %c0_24] : memref<4x1xf32, #tpu.memory_space<vmem>>, vector<4x1xf32>
    tpu.vector_store %arg7[%c0_23, %c0_24], %71 {strides = array<i32>} : memref<4x1xf32, #tpu.memory_space<vmem>>, vector<4x1xf32>,
    %c0_25 = arith.constant 0 : index
    %c0_26 = arith.constant 0 : index
    %73 = vector.load %arg6[%c0_25, %c0_26] : memref<4x1xf32, #tpu.memory_space<vmem>>, vector<4x1xf32>
    %cst_27 = arith.constant dense<0.000000e+00> : vector<4xf32>
    %74 = vector.multi_reduction <add>, %13, %cst_27 [1] : vector<4x32xf32> to vector<4xf32>
    %75 = vector.shape_cast %74 : vector<4xf32> to vector<4x1xf32>
    %76 = arith.addf %73, %75 : vector<4x1xf32>
    %c0_28 = arith.constant 0 : index
    %c0_29 = arith.constant 0 : index
    %77 = vector.load %arg6[%c0_28, %c0_29] : memref<4x1xf32, #tpu.memory_space<vmem>>, vector<4x1xf32>
    tpu.vector_store %arg6[%c0_28, %c0_29], %76 {strides = array<i32>} : memref<4x1xf32, #tpu.memory_space<vmem>>, vector<4x1xf32>,
    %c0_i32_30 = arith.constant 0 : i32
    %78 = arith.cmpi eq, %arg0, %c0_i32_30 : i32
    %79 = arith.extui %78 : i1 to i32
    %c0_i32_31 = arith.constant 0 : i32
    %80 = arith.cmpi ne, %79, %c0_i32_31 : i32
    scf.if %80 {
      %c0_32 = arith.constant 0 : index
      %c0_33 = arith.constant 0 : index
      %81 = vector.load %arg3[%c0_32, %c0_33] : memref<4x1xf32, #tpu.memory_space<vmem>>, vector<4x1xf32>
      %cst_34 = arith.constant 0.000000e+00 : f32
      %82 = vector.broadcast %cst_34 : f32 to vector<4x1xf32>
      %83 = arith.cmpf ogt, %81, %82 : vector<4x1xf32>
      %84 = arith.extui %83 : vector<4x1xi1> to vector<4x1xi32>
      %85 = arith.sitofp %84 : vector<4x1xi32> to vector<4x1xf32>
      %c0_35 = arith.constant 0 : index
      %c0_36 = arith.constant 0 : index
      %86 = vector.load %arg7[%c0_35, %c0_36] : memref<4x1xf32, #tpu.memory_space<vmem>>, vector<4x1xf32>
      %87 = arith.mulf %86, %85 : vector<4x1xf32>
      %88 = vector.shape_cast %87 : vector<4x1xf32> to vector<1x4x1xf32>
      %cst_37 = arith.constant dense<0.000000e+00> : vector<1xf32>
      %89 = vector.multi_reduction <add>, %88, %cst_37 [1, 2] : vector<1x4x1xf32> to vector<1xf32>
      %90 = vector.shape_cast %89 : vector<1xf32> to vector<1x1x1xf32>
      %91 = vector.extract %90[0, 0, 0] : f32 from vector<1x1x1xf32>
      %92 = vector.shape_cast %85 : vector<4x1xf32> to vector<1x4x1xf32>
      %cst_38 = arith.constant dense<0.000000e+00> : vector<1xf32>
      %93 = vector.multi_reduction <add>, %92, %cst_38 [1, 2] : vector<1x4x1xf32> to vector<1xf32>
      %94 = vector.shape_cast %93 : vector<1xf32> to vector<1x1x1xf32>
      %95 = vector.extract %94[0, 0, 0] : f32 from vector<1x1x1xf32>
      %96 = arith.divf %91, %95 : f32
      %97 = vector.broadcast %96 : f32 to vector<1x1xf32>
      %c0_39 = arith.constant 0 : index
      %c0_40 = arith.constant 0 : index
      %98 = vector.load %arg5[%c0_39, %c0_40] : memref<1x1xf32, #tpu.memory_space<vmem>>, vector<1x1xf32>
      tpu.vector_store %arg5[%c0_39, %c0_40], %97 {strides = array<i32>} : memref<1x1xf32, #tpu.memory_space<vmem>>, vector<1x1xf32>,
    } else {
    }
    return
  }
  func.func @transform_0(%arg0: i32) -> (i32, i32, i32) {
    %c0_i32 = arith.constant 0 : i32
    %0 = arith.subi %c0_i32, %arg0 : i32
    %c0_i32_0 = arith.constant 0 : i32
    %c0_i32_1 = arith.constant 0 : i32
    %c0_i32_2 = arith.constant 0 : i32
    return %c0_i32_0, %0, %c0_i32_1 : i32, i32, i32
  }
  func.func @transform_1(%arg0: i32) -> (i32, i32, i32) {
    %c0_i32 = arith.constant 0 : i32
    %0 = arith.subi %c0_i32, %arg0 : i32
    %c0_i32_0 = arith.constant 0 : i32
    %c0_i32_1 = arith.constant 0 : i32
    %c0_i32_2 = arith.constant 0 : i32
    return %c0_i32_0, %0, %c0_i32_1 : i32, i32, i32
  }
  func.func @transform_2(%arg0: i32) -> (i32, i32) {
    %c0_i32 = arith.constant 0 : i32
    %c0_i32_0 = arith.constant 0 : i32
    %c0_i32_1 = arith.constant 0 : i32
    return %c0_i32, %c0_i32_0 : i32, i32
  }
  func.func @transform_3(%arg0: i32) -> (i32, i32) {
    %c0_i32 = arith.constant 0 : i32
    %c0_i32_0 = arith.constant 0 : i32
    %c0_i32_1 = arith.constant 0 : i32
    return %c0_i32, %c0_i32_0 : i32, i32
  }
  func.func @transform_4(%arg0: i32) -> (i32, i32) {
    %c0_i32 = arith.constant 0 : i32
    %c0_i32_0 = arith.constant 0 : i32
    %c0_i32_1 = arith.constant 0 : i32
    return %c0_i32, %c0_i32_0 : i32, i32
  }
}

</mosaic_0001>

<llo_original>
// kernel: eq.12
$region0: #{eq.12}
  %s0 = inlined_call_operand.hbm [shape: s32[2,16,16], index: 0, kind: input, shape index: {}]
  %s1 = inlined_call_operand.vmem [shape: s32[512], index: 1, kind: output, shape index: {}]
  $region1: #{eq.12} parent=0
    #allocation0 [shape = 'u8[16384]{0}', space=vmem, size = 0x4000, scoped, tag = 'operand span for operand 0']
    #allocation1 [shape = 's32[1]{0}', space=sflag, size = 0x4, scoped, tag = 'scoped memory for eq.12']
    #allocation2 [shape = 'u8[4096]{0}', space=vmem, size = 0x1000, scoped, tag = 'scoped mem for output reshape']
    %2 = vsyncpa [#allocation1], 0
    %s4 = ssub.s32 512, 512
    %5 = vsyncadd [#allocation1], %s4
    %s7 = sshll.u32 [#allocation0], 4
    %s8 = int_to_ptr.vmem [resolvable:$true] %s7
    %10 = dma.hbm_to_vmem [thread:$0]  %s0, 512, %s8, [#allocation1]
    %11 = dma.done [#allocation1], 512
    %v12 = vld [vmem:[#allocation0] ss:$8 sm:$0xf]
    %vm13 = vcmask 130048
    %14 = vst.msk [vmem:[#allocation2] sm:$0xf] %vm13, %v12
    %s15 = scalar_lea.vmem [#allocation0], 7
    %v16 = vld [vmem:[%s15] ss:$8 sm:$0xf]
    %17 = vrot.lane.b32.xlu0 %v16, 112
    %v18 = vpop.permute.xlu0 %17
    %vm19 = vcmask 1048448
    %20 = vst.msk [vmem:[#allocation2] sm:$0xf] %vm19, %v18
    %s21 = scalar_lea.vmem [#allocation0], 6
    %v22 = vld [vmem:[%s21] ss:$8 sm:$0xf]
    %23 = vrot.lane.b32.xlu0 %v22, 96
    %v24 = vpop.permute.xlu0 %23
    %vm25 = vcmask 917248
    %26 = vst.msk [vmem:[#allocation2] sm:$0xf] %vm25, %v24
    %s27 = scalar_lea.vmem [#allocation0], 5
    %v28 = vld [vmem:[%s27] ss:$8 sm:$0xf]
    %29 = vrot.lane.b32.xlu0 %v28, 80
    %v30 = vpop.permute.xlu0 %29
    %vm31 = vcmask 786048
    %32 = vst.msk [vmem:[#allocation2] sm:$0xf] %vm31, %v30
    %s33 = scalar_lea.vmem [#allocation0], 4
    %v34 = vld [vmem:[%s33] ss:$8 sm:$0xf]
    %35 = vrot.lane.b32.xlu0 %v34, 64
    %v36 = vpop.permute.xlu0 %35
    %vm37 = vcmask 654848
    %38 = vst.msk [vmem:[#allocation2] sm:$0xf] %vm37, %v36
    %s39 = scalar_lea.vmem [#allocation0], 3
    %v40 = vld [vmem:[%s39] ss:$8 sm:$0xf]
    %41 = vrot.lane.b32.xlu0 %v40, 48
    %v42 = vpop.permute.xlu0 %41
    %vm43 = vcmask 523648
    %44 = vst.msk [vmem:[#allocation2] sm:$0xf] %vm43, %v42
    %s45 = scalar_lea.vmem [#allocation0], 2
    %v46 = vld [vmem:[%s45] ss:$8 sm:$0xf]
    %47 = vrot.lane.b32.xlu0 %v46, 32
    %v48 = vpop.permute.xlu0 %47
    %vm49 = vcmask 392448
    %50 = vst.msk [vmem:[#allocation2] sm:$0xf] %vm49, %v48
    %s51 = scalar_lea.vmem [#allocation0], 1
    %v52 = vld [vmem:[%s51] ss:$8 sm:$0xf]
    %53 = vrot.lane.b32.xlu0 %v52, 16
    %v54 = vpop.permute.xlu0 %53
    %vm55 = vcmask 261248
    %56 = vst.msk [vmem:[#allocation2] sm:$0xf] %vm55, %v54
    %s58 = sshllo.u32 0, 4
    %v60 = vld [vmem:[#allocation2] sm:%s58]
    %s61 = sshllo.u32 0, 4
    %62 = vst [vmem:[%s1] sm:%s61] %v60
    %63 = vsyncpa [#allocation1], 1

// kernel: _lovasz_forward.2
$region0: #{_lovasz_forward.2}
  #allocation0 [shape = 'u32[]', space=smem, size = 0x4, offset = 0x4, fixed_abs, tag = 'smem constant byte address 0x4 - core index']
  #allocation1 [shape = 'u32[144,128]{1,0:T(1,128)}', space=vmem, size = 0x12000, scoped, tag = 'internal scratch']
  %s0 = inlined_call_operand.hbm [shape: f32[2,4,16,16], index: 0, kind: input, shape index: {}]
  %s1 = inlined_call_operand.vmem [shape: s32[2,16,16], index: 1, kind: input, shape index: {}]
  %s2 = inlined_call_operand.vmem [shape: f32[4,2,16,16], index: 2, kind: output, shape index: {}]
  %s3 = sld [smem:[#allocation0]]
  $region79: #{_lovasz_forward.2} parent=0
    _
  %s5 = ssub.s32 1, %s3
  %s6 = scalar_select 0, %s5, %s3
  $region1: #{_lovasz_forward.2} parent=0
    #allocation2 [shape = 'u8[65536]{0}', space=vmem, size = 0x10000, scoped, tag = 'input window, operand 0']
    #allocation3 [shape = 's32[2]{0}', space=sflag, size = 0x8, scoped, tag = 'scoped memory for _lovasz_forward.2']
    #allocation4 [shape = 'u8[65536]{0}', space=vmem, size = 0x10000, scoped, tag = 'output window, operand 0']
    %7 = vsyncpa [#allocation3], 0
    %s8 = scalar_lea.sflag [#allocation3], 1
    %9 = vsyncpa %s8, 0
    loop: start=0, step=1, limit=4
    $region2: #{_lovasz_forward.2} parent=1 // loop_pre_header
      _
    $region3: #{_lovasz_forward.2} parent=1 // loop_header
      %s11 = sphi 0, %s15
      %p12 = scmp.ge.s32.totalorder %s11, 4
      %s18 = sphi 0, %s30
      %s19 = sphi 0, %s26
      %s20 = sphi 0, %s18
      %s21 = sphi 0, %s19
      %s22 = sphi 0, %s20
      %s23 = sphi 0, %s21
      %s35 = sphi 0, %s37
      %s38 = sphi 0, %s35
      %s39 = sphi 0, %s38
      %s55 = sphi 0, %s39
      %s63 = sphi 0, %s65
      %s66 = sphi 0, %s63
      %s67 = sphi 0, %s66
      %s83 = sphi 0, %s67
      %s91 = sphi 0, %s93
      %s94 = sphi 0, %s91
      %s95 = sphi 0, %s94
      %s111 = sphi 0, %s95
    $region4: #{_lovasz_forward.2} parent=1 // loop_header_branch
      %14 = sbr.rel (%p12) target = $region8
    $region5: #{_lovasz_forward.2} parent=1 // loop_body
      %s16 = ssub.s32 %s11, 1
      %s17 = ssub.s32 %s11, 2
      %s24 = sadd.s32 1, %s19
      %p25 = scmp.ge.s32.totalorder %s24, 1
      %s26 = scalar_select %p25, 0, %s24
      %s27 = sadd.s32 1, %s18
      %s28 = scalar_select %p25, %s27, %s18
      %p29 = scmp.ge.s32.totalorder %s28, 2
      %s30 = scalar_select %p29, 0, %s28
      %s31 = ssub.s32 %s18, %s30
      %s32 = ssub.s32 %s19, %s26
      %s33 = sor.u32 %s31, %s32
      %p34 = scmp.eq.s32.totalorder %s33, 0
      %s36 = sadd.s32 %s35, 1
      %s37 = scalar_select %p34, %s35, %s36
      %p40 = pneg %p34
      %p41 = scmp.eq.s32.totalorder %s11, 1
      %p42 = por %p40, %p41
      %p43 = scmp.ne.s32.totalorder %s35, %s38
      %p44 = scmp.eq.s32.totalorder %s11, 0
      %p45 = por %p43, %p44
      %p46 = scmp.ne.s32.totalorder %s35, %s38
      %p47 = scmp.eq.s32.totalorder %s16, 1
      %p48 = por %p46, %p47
      %p49 = scmp.ne.s32.totalorder %s38, %s39
      %p50 = scmp.eq.s32.totalorder %s16, 0
      %p51 = por %p49, %p50
      %p52 = scmp.ne.s32.totalorder %s38, %s39
      %p53 = scmp.eq.s32.totalorder %s17, 1
      %p54 = por %p52, %p53
      %p56 = scmp.ne.s32.totalorder %s39, %s55
      %p57 = scmp.eq.s32.totalorder %s17, 0
      %p58 = por %p56, %p57
      %s59 = ssub.s32 %s18, %s30
      %s60 = ssub.s32 %s19, %s26
      %s61 = sor.u32 %s59, %s60
      %p62 = scmp.eq.s32.totalorder %s61, 0
      %s64 = sadd.s32 %s63, 1
      %s65 = scalar_select %p62, %s63, %s64
      %p68 = pneg %p62
      %p69 = scmp.eq.s32.totalorder %s11, 1
      %p70 = por %p68, %p69
      %p71 = scmp.ne.s32.totalorder %s63, %s66
      %p72 = scmp.eq.s32.totalorder %s11, 0
      %p73 = por %p71, %p72
      %p74 = scmp.ne.s32.totalorder %s63, %s66
      %p75 = scmp.eq.s32.totalorder %s16, 1
      %p76 = por %p74, %p75
      %p77 = scmp.ne.s32.totalorder %s66, %s67
      %p78 = scmp.eq.s32.totalorder %s16, 0
      %p79 = por %p77, %p78
      %p80 = scmp.ne.s32.totalorder %s66, %s67
      %p81 = scmp.eq.s32.totalorder %s17, 1
      %p82 = por %p80, %p81
      %p84 = scmp.ne.s32.totalorder %s67, %s83
      %p85 = scmp.eq.s32.totalorder %s17, 0
      %p86 = por %p84, %p85
      %s87 = ssub.s32 %s18, %s30
      %s88 = ssub.s32 %s19, %s26
      %s89 = sor.u32 %s87, %s88
      %p90 = scmp.eq.s32.totalorder %s89, 0
      %s92 = sadd.s32 %s91, 1
      %s93 = scalar_select %p90, %s91, %s92
      %p96 = pneg %p90
      %p97 = scmp.eq.s32.totalorder %s11, 1
      %p98 = por %p96, %p97
      %p99 = scmp.ne.s32.totalorder %s91, %s94
      %p100 = scmp.eq.s32.totalorder %s11, 0
      %p101 = por %p99, %p100
      %p102 = scmp.ne.s32.totalorder %s91, %s94
      %p103 = scmp.eq.s32.totalorder %s16, 1
      %p104 = por %p102, %p103
      %p105 = scmp.ne.s32.totalorder %s94, %s95
      %p106 = scmp.eq.s32.totalorder %s16, 0
      %p107 = por %p105, %p106
      %p108 = scmp.ne.s32.totalorder %s94, %s95
      %p109 = scmp.eq.s32.totalorder %s17, 1
      %p110 = por %p108, %p109
      %p112 = scmp.ne.s32.totalorder %s95, %s111
      %p113 = scmp.eq.s32.totalorder %s17, 0
      %p114 = por %p112, %p113
      %p115 = scmp.le.s32.totalorder 1, %s11
      %p116 = scmp.lt.s32.totalorder %s11, 3
      %p117 = pnand %p115, %p116
      %p118 = pneg %p117
      // Predicated region
      $region9: #{_lovasz_forward.2} parent=5 // pred_check
        _
      $region10: #{_lovasz_forward.2} parent=5 // pred_check_branch
        %120 = sbr.rel (%p117) target = $region12
      $region11: #{_lovasz_forward.2} parent=5 // pred_region
        %s121 = ssub.s32 %s11, 1
      $region12: #{_lovasz_forward.2} parent=5 // pred_fallthru
        _
      %p122 = scmp.lt.s32.totalorder %s11, 2
      // Predicated region
      $region13: #{_lovasz_forward.2} parent=5 // pred_check
        %p123 = pneg %p122
      $region14: #{_lovasz_forward.2} parent=5 // pred_check_branch
        %125 = sbr.rel (%p123) target = $region16
      $region15: #{_lovasz_forward.2} parent=5 // pred_region
        // Predicated region
        $region17: #{_lovasz_forward.2} parent=15 // pred_check
          %p126 = pneg %p45
        $region18: #{_lovasz_forward.2} parent=15 // pred_check_branch
          %128 = sbr.rel (%p126) target = $region20
        $region19: #{_lovasz_forward.2} parent=15 // pred_region
          %s129 = sand.u32 %s35, 1
          %s130 = scalar_lea.sflag [#allocation3], %s129
          %s131 = sand.u32 %s35, 1
          %s132 = smul.addr %s131, 64
          %s133 = scalar_lea.vmem [#allocation2], %s132
          %s134 = smul.u32 2, %s19
          %s136 = ssub.s32 1024, 1024
          %137 = vsyncadd %s130, %s136
          %s138 = smul.addr %s18, 8
          %s139 = sadd.s32 %s134, %s138
          %s140 = smul.addr %s139, 128
          %s141 = scalar_lea.hbm %s0, %s140
          %s142 = sshll.u32 %s133, 4
          %s143 = int_to_ptr.vmem [resolvable:$true] %s142
          %148 = dma.hbm_to_vmem [thread:$0]  %s141, 1024, %s143, %s130, 128, 128, 8
        $region20: #{_lovasz_forward.2} parent=15 // pred_fallthru
          _
        // Predicated region
        $region21: #{_lovasz_forward.2} parent=15 // pred_check
          %p149 = pneg %p73
        $region22: #{_lovasz_forward.2} parent=15 // pred_check_branch
          %151 = sbr.rel (%p149) target = $region24
        $region23: #{_lovasz_forward.2} parent=15 // pred_region
          %s152 = smul.u32 2, %s19
          %p153 = scmp.lt.s32.totalorder %s18, 1
          %s154 = scalar_select %p153, %s18, 1
          %p155 = scmp.lt.s32.totalorder %s152, 1
          %s156 = scalar_select %p155, %s152, 1
          %s157 = smul.addr %s154, 2
          %s158 = sadd.s32 %s156, %s157
          %s159 = smul.addr %s158, 8
          %s160 = scalar_lea.vmem %s1, %s159
          %s161 = smul.u32 2, %s19
        $region24: #{_lovasz_forward.2} parent=15 // pred_fallthru
          _
      $region16: #{_lovasz_forward.2} parent=5 // pred_fallthru
        _
      %p162 = scmp.le.s32.totalorder 1, %s11
      %p163 = scmp.lt.s32.totalorder %s11, 3
      %p164 = pnand %p162, %p163
      %p165 = pneg %p164
      // Predicated region
      $region25: #{_lovasz_forward.2} parent=5 // pred_check
        _
      $region26: #{_lovasz_forward.2} parent=5 // pred_check_branch
        %167 = sbr.rel (%p164) target = $region28
      $region27: #{_lovasz_forward.2} parent=5 // pred_region
        %s168 = ssub.s32 %s11, 1
        %s169 = sand.u32 %s38, 1
        %s170 = scalar_lea.sflag [#allocation3], %s169
        %s171 = sand.u32 %s38, 1
        %s172 = smul.addr %s171, 64
        %s173 = scalar_lea.vmem [#allocation2], %s172
        // Predicated region
        $region29: #{_lovasz_forward.2} parent=27 // pred_check
          %p174 = pneg %p51
        $region30: #{_lovasz_forward.2} parent=27 // pred_check_branch
          %176 = sbr.rel (%p174) target = $region32
        $region31: #{_lovasz_forward.2} parent=27 // pred_region
          %177 = dma.done %s170, 1024
        $region32: #{_lovasz_forward.2} parent=27 // pred_fallthru
          _
        %s178 = sand.u32 %s38, 1
        %s179 = scalar_lea.sflag [#allocation3], %s178
        %s180 = sand.u32 %s38, 1
        %s181 = smul.addr %s180, 64
        %s182 = scalar_lea.vmem [#allocation2], %s181
        %p183 = pneg %p51
        %p184 = pneg %p48
        %s185 = smul.u32 2, %s21
        %p186 = scmp.lt.s32.totalorder %s20, 1
        %s187 = scalar_select %p186, %s20, 1
        %p188 = scmp.lt.s32.totalorder %s185, 1
        %s189 = scalar_select %p188, %s185, 1
        %s190 = smul.addr %s187, 2
        %s191 = sadd.s32 %s189, %s190
        %s192 = smul.addr %s191, 8
        %s193 = scalar_lea.vmem %s1, %s192
        %p194 = pneg %p79
        %p195 = pneg %p76
        %p196 = pneg %p107
        %p197 = pneg %p104
        %s198 = sand.u32 %s94, 1
        %s199 = sand.u32 %s94, 1
        %s200 = smul.addr %s199, 64
        %s201 = scalar_lea.vmem [#allocation4], %s200
        %s202 = smul.u32 2, %s21
        %s203 = smul.u32 2, %s21
        %p204 = scmp.lt.s32.totalorder %s20, 1
        %s205 = scalar_select %p204, %s20, 1
        %p206 = scmp.lt.s32.totalorder %s203, 1
        %s207 = scalar_select %p206, %s203, 1
        %s208 = smul.addr %s205, 2
        %s209 = sadd.s32 %s207, %s208
        %s210 = smul.addr %s209, 8
        %s211 = scalar_lea.vmem %s1, %s210
        %s212 = smul.u32 2, %s21
        %s213 = smul.u32 2, %s21
        %v214 = vld [vmem:[%s173] sm:$0xff]
        %v215 = vld [vmem:[%s173 + $0x8] sm:$0xff]
        %v216 = vld [vmem:[%s173 + $0x10] sm:$0xff]
        %v217 = vld [vmem:[%s173 + $0x18] sm:$0xff]
        %v218 = vld [vmem:[%s173 + $0x20] sm:$0xff]
        %v219 = vld [vmem:[%s173 + $0x28] sm:$0xff]
        %v220 = vld [vmem:[%s173 + $0x30] sm:$0xff]
        %v221 = vld [vmem:[%s173 + $0x38] sm:$0xff]
        %vm222 = vcmask 130048
        %v223 = vsel %vm222, %v214, -inf
        %224 = vmax.xlane.f32.xlu0 %v223
        %v225 = vpop.xlane.xlu0 %224
        %v226 = vsel %vm222, %v215, -inf
        %227 = vmax.xlane.f32.xlu0 %v226
        %v228 = vpop.xlane.xlu0 %227
        %v229 = vsel %vm222, %v216, -inf
        %230 = vmax.xlane.f32.xlu0 %v229
        %v231 = vpop.xlane.xlu0 %230
        %v232 = vsel %vm222, %v217, -inf
        %233 = vmax.xlane.f32.xlu0 %v232
        %v234 = vpop.xlane.xlu0 %233
        %v235 = vsel %vm222, %v218, -inf
        %236 = vmax.xlane.f32.xlu0 %v235
        %v237 = vpop.xlane.xlu0 %236
        %v238 = vsel %vm222, %v219, -inf
        %239 = vmax.xlane.f32.xlu0 %v238
        %v240 = vpop.xlane.xlu0 %239
        %v241 = vsel %vm222, %v220, -inf
        %242 = vmax.xlane.f32.xlu0 %v241
        %v243 = vpop.xlane.xlu0 %242
        %v244 = vsel %vm222, %v221, -inf
        %245 = vmax.xlane.f32.xlu0 %v244
        %v246 = vpop.xlane.xlu0 %245
        %v247 = vsub.f32 %v214, %v225
        %v248 = vsub.f32 %v215, %v228
        %v249 = vsub.f32 %v216, %v231
        %v250 = vsub.f32 %v217, %v234
        %v251 = vsub.f32 %v218, %v237
        %v252 = vsub.f32 %v219, %v240
        %v253 = vsub.f32 %v220, %v243
        %v254 = vsub.f32 %v221, %v246
        %v255 = vmul.f32 %v247, 1.442695
        %v256 = vpow.pop %v255
        %v257 = vmul.f32 %v248, 1.442695
        %v258 = vpow.pop %v257
        %v259 = vmul.f32 %v249, 1.442695
        %v260 = vpow.pop %v259
        %v261 = vmul.f32 %v250, 1.442695
        %v262 = vpow.pop %v261
        %v263 = vmul.f32 %v251, 1.442695
        %v264 = vpow.pop %v263
        %v265 = vmul.f32 %v252, 1.442695
        %v266 = vpow.pop %v265
        %v267 = vmul.f32 %v253, 1.442695
        %v268 = vpow.pop %v267
        %v269 = vmul.f32 %v254, 1.442695
        %v270 = vpow.pop %v269
        %v271 = vsel %vm222, %v256, 0.0
        %272 = vadd.xlane.f32.xlu0 %v271
        %v273 = vpop.xlane.xlu0 %272
        %v274 = vsel %vm222, %v258, 0.0
        %275 = vadd.xlane.f32.xlu0 %v274
        %v276 = vpop.xlane.xlu0 %275
        %v277 = vsel %vm222, %v260, 0.0
        %278 = vadd.xlane.f32.xlu0 %v277
        %v279 = vpop.xlane.xlu0 %278
        %v280 = vsel %vm222, %v262, 0.0
        %281 = vadd.xlane.f32.xlu0 %v280
        %v282 = vpop.xlane.xlu0 %281
        %v283 = vsel %vm222, %v264, 0.0
        %284 = vadd.xlane.f32.xlu0 %v283
        %v285 = vpop.xlane.xlu0 %284
        %v286 = vsel %vm222, %v266, 0.0
        %287 = vadd.xlane.f32.xlu0 %v286
        %v288 = vpop.xlane.xlu0 %287
        %v289 = vsel %vm222, %v268, 0.0
        %290 = vadd.xlane.f32.xlu0 %v289
        %v291 = vpop.xlane.xlu0 %290
        %v292 = vsel %vm222, %v270, 0.0
        %293 = vadd.xlane.f32.xlu0 %v292
        %v294 = vpop.xlane.xlu0 %293
        %v295 = vrcp.pop %v273
        %v296 = vrcp.pop %v276
        %v297 = vrcp.pop %v279
        %v298 = vrcp.pop %v282
        %v299 = vrcp.pop %v285
        %v300 = vrcp.pop %v288
        %v301 = vrcp.pop %v291
        %v302 = vrcp.pop %v294
        %v303 = vmul.f32 %v256, %v295
        %v304 = vmul.f32 %v258, %v296
        %v305 = vmul.f32 %v260, %v297
        %v306 = vmul.f32 %v262, %v298
        %v307 = vmul.f32 %v264, %v299
        %v308 = vmul.f32 %v266, %v300
        %v309 = vmul.f32 %v268, %v301
        %v310 = vmul.f32 %v270, %v302
        %v311 = vld [vmem:[%s211] sm:$0xff]
        %v312 = vld [vmem:[%s211 + $0x8] sm:$0xff]
        %vm313 = vcmp.eq.s32.totalorder %v311, 0
        %vm314 = vcmp.eq.s32.totalorder %v312, 0
        %vm315 = vcmp.eq.s32.totalorder %v311, 1
        %vm316 = vcmp.eq.s32.totalorder %v312, 1
        %vm317 = vcmp.eq.s32.totalorder %v311, 2
        %vm318 = vcmp.eq.s32.totalorder %v312, 2
        %vm319 = vcmp.eq.s32.totalorder %v311, 3
        %vm320 = vcmp.eq.s32.totalorder %v312, 3
        %v321 = vsel %vm313, 1, 0
        %v322 = vsel %vm314, 1, 0
        %v323 = vsel %vm315, 1, 0
        %v324 = vsel %vm316, 1, 0
        %v325 = vsel %vm317, 1, 0
        %v326 = vsel %vm318, 1, 0
        %v327 = vsel %vm319, 1, 0
        %v328 = vsel %vm320, 1, 0
        %v329 = vcvt.s32.f32 %v321
        %v330 = vcvt.s32.f32 %v322
        %v331 = vcvt.s32.f32 %v323
        %v332 = vcvt.s32.f32 %v324
        %v333 = vcvt.s32.f32 %v325
        %v334 = vcvt.s32.f32 %v326
        %v335 = vcvt.s32.f32 %v327
        %v336 = vcvt.s32.f32 %v328
        %v337 = vsub.f32 %v329, %v303
        %v338 = vsub.f32 %v330, %v304
        %v339 = vsub.f32 %v331, %v305
        %v340 = vsub.f32 %v332, %v306
        %v341 = vsub.f32 %v333, %v307
        %v342 = vsub.f32 %v334, %v308
        %v343 = vsub.f32 %v335, %v309
        %v344 = vsub.f32 %v336, %v310
        %v345 = vand.u32 2147483647, %v337
        %v346 = vand.u32 2147483647, %v338
        %v347 = vand.u32 2147483647, %v339
        %v348 = vand.u32 2147483647, %v340
        %v349 = vand.u32 2147483647, %v341
        %v350 = vand.u32 2147483647, %v342
        %v351 = vand.u32 2147483647, %v343
        %v352 = vand.u32 2147483647, %v344
        %353 = vst.msk [vmem:[%s201] sm:$0xff] %vm222, %v345
        %354 = vst.msk [vmem:[%s201 + $0x8] sm:$0xff] %vm222, %v346
        %355 = vst.msk [vmem:[%s201 + $0x10] sm:$0xff] %vm222, %v347
        %356 = vst.msk [vmem:[%s201 + $0x18] sm:$0xff] %vm222, %v348
        %357 = vst.msk [vmem:[%s201 + $0x20] sm:$0xff] %vm222, %v349
        %358 = vst.msk [vmem:[%s201 + $0x28] sm:$0xff] %vm222, %v350
        %359 = vst.msk [vmem:[%s201 + $0x30] sm:$0xff] %vm222, %v351
        %360 = vst.msk [vmem:[%s201 + $0x38] sm:$0xff] %vm222, %v352
        %s361 = sand.u32 %s94, 1
        %s362 = sand.u32 %s94, 1
        %s363 = smul.addr %s362, 64
        %s364 = scalar_lea.vmem [#allocation4], %s363
        // Predicated region
        $region33: #{_lovasz_forward.2} parent=27 // pred_check
          %p365 = pneg %p104
        $region34: #{_lovasz_forward.2} parent=27 // pred_check_branch
          %367 = sbr.rel (%p365) target = $region36
        $region35: #{_lovasz_forward.2} parent=27 // pred_region
          %s368 = smul.u32 2, %s21
          %s369 = smul.addr %s20, 2
          %s370 = sadd.s32 %s368, %s369
          %s371 = smul.addr %s370, 8
          %s372 = scalar_lea.vmem %s2, %s371
          // Predicated region
          $region37: #{_lovasz_forward.2} parent=35 // pred_check
            _
          $region38: #{_lovasz_forward.2} parent=35 // pred_check_branch
            %374 = sbr.rel (0) target = $region40
          $region39: #{_lovasz_forward.2} parent=35 // pred_region
            // Predicated region
            $region41: #{_lovasz_forward.2} parent=39 // pred_check
              _
            $region42: #{_lovasz_forward.2} parent=39 // pred_check_branch
              %376 = sbr.rel (0) target = $region44
            $region43: #{_lovasz_forward.2} parent=39 // pred_region
              // Predicated region
              $region56: #{_lovasz_forward.2} parent=43 // pred_check
                _
              $region57: #{_lovasz_forward.2} parent=43 // pred_check_branch
                %405 = sbr.rel (0) target = $region59
              $region58: #{_lovasz_forward.2} parent=43 // pred_region
                loop: start=0, step=1, limit=1
                $region60: #{_lovasz_forward.2} parent=58 // loop_pre_header
                  _
                $region61: #{_lovasz_forward.2} parent=58 // loop_header
                  %s407 = sphi 0, %s411
                  %p408 = scmp.ge.s32.totalorder %s407, 1
                  %s412 = sphi %s364, %s364
                  %s413 = sphi %s372, %s372
                $region62: #{_lovasz_forward.2} parent=58 // loop_header_branch
                  %410 = sbr.rel (%p408) target = $region66
                $region63: #{_lovasz_forward.2} parent=58 // loop_body
                  %v414 = vld [vmem:[%s412] sm:$0xff]
                  %415 = vst [vmem:[%s413] sm:$0xff] %v414
                  %v416 = vld [vmem:[%s412 + $0x8] sm:$0xff]
                  %417 = vst [vmem:[%s413 + $0x8] sm:$0xff] %v416
                  %v418 = vld [vmem:[%s412 + $0x10] sm:$0xff]
                  %419 = vst [vmem:[%s413 + $0x20] sm:$0xff] %v418
                  %v420 = vld [vmem:[%s412 + $0x18] sm:$0xff]
                  %421 = vst [vmem:[%s413 + $0x28] sm:$0xff] %v420
                  %v422 = vld [vmem:[%s412 + $0x20] sm:$0xff]
                  %423 = vst [vmem:[%s413 + $0x40] sm:$0xff] %v422
                  %v424 = vld [vmem:[%s412 + $0x28] sm:$0xff]
                  %425 = vst [vmem:[%s413 + $0x48] sm:$0xff] %v424
                  %v426 = vld [vmem:[%s412 + $0x30] sm:$0xff]
                  %427 = vst [vmem:[%s413 + $0x60] sm:$0xff] %v426
                  %v428 = vld [vmem:[%s412 + $0x38] sm:$0xff]
                  %429 = vst [vmem:[%s413 + $0x68] sm:$0xff] %v428
                $region64: #{_lovasz_forward.2} parent=58 // loop_footer
                  %s411 = sadd.s32 1, %s407
                $region65: #{_lovasz_forward.2} parent=58 // loop_footer_branch
                  %406 = sbr.rel target = $region61
                $region66: #{_lovasz_forward.2} parent=58 // loop_exit
                  _
              $region59: #{_lovasz_forward.2} parent=43 // pred_fallthru
                _
              // Predicated region
              $region67: #{_lovasz_forward.2} parent=43 // pred_check
                _
              $region68: #{_lovasz_forward.2} parent=43 // pred_check_branch
                %431 = sbr.rel target = $region70
              $region69: #{_lovasz_forward.2} parent=43 // pred_region
                _
              $region70: #{_lovasz_forward.2} parent=43 // pred_fallthru
                _
            $region44: #{_lovasz_forward.2} parent=39 // pred_fallthru
              _
            // Predicated region
            $region45: #{_lovasz_forward.2} parent=39 // pred_check
              _
            $region46: #{_lovasz_forward.2} parent=39 // pred_check_branch
              %378 = sbr.rel target = $region48
            $region47: #{_lovasz_forward.2} parent=39 // pred_region
              loop: start=0, step=1, limit=1
              $region49: #{_lovasz_forward.2} parent=47 // loop_pre_header
                _
              $region50: #{_lovasz_forward.2} parent=47 // loop_header
                %s381 = sphi 0, %s385
                %p382 = scmp.ge.s32.totalorder %s381, 1
                %s386 = sphi %s364, %s364
                %s387 = sphi %s372, %s372
              $region51: #{_lovasz_forward.2} parent=47 // loop_header_branch
                %384 = sbr.rel (%p382) target = $region55
              $region52: #{_lovasz_forward.2} parent=47 // loop_body
                %v388 = vld [vmem:[%s386] sm:$0xff]
                %389 = vst [vmem:[%s387] sm:$0xff] %v388
                %v390 = vld [vmem:[%s386 + $0x8] sm:$0xff]
                %391 = vst [vmem:[%s387 + $0x8] sm:$0xff] %v390
                %v392 = vld [vmem:[%s386 + $0x10] sm:$0xff]
                %393 = vst [vmem:[%s387 + $0x20] sm:$0xff] %v392
                %v394 = vld [vmem:[%s386 + $0x18] sm:$0xff]
                %395 = vst [vmem:[%s387 + $0x28] sm:$0xff] %v394
                %v396 = vld [vmem:[%s386 + $0x20] sm:$0xff]
                %397 = vst [vmem:[%s387 + $0x40] sm:$0xff] %v396
                %v398 = vld [vmem:[%s386 + $0x28] sm:$0xff]
                %399 = vst [vmem:[%s387 + $0x48] sm:$0xff] %v398
                %v400 = vld [vmem:[%s386 + $0x30] sm:$0xff]
                %401 = vst [vmem:[%s387 + $0x60] sm:$0xff] %v400
                %v402 = vld [vmem:[%s386 + $0x38] sm:$0xff]
                %403 = vst [vmem:[%s387 + $0x68] sm:$0xff] %v402
              $region53: #{_lovasz_forward.2} parent=47 // loop_footer
                %s385 = sadd.s32 1, %s381
              $region54: #{_lovasz_forward.2} parent=47 // loop_footer_branch
                %380 = sbr.rel target = $region50
              $region55: #{_lovasz_forward.2} parent=47 // loop_exit
                _
            $region48: #{_lovasz_forward.2} parent=39 // pred_fallthru
              _
          $region40: #{_lovasz_forward.2} parent=35 // pred_fallthru
            _
          %432 = vnop
        $region36: #{_lovasz_forward.2} parent=27 // pred_fallthru
          _
      $region28: #{_lovasz_forward.2} parent=5 // pred_fallthru
        _
      %p433 = scmp.le.s32.totalorder 2, %s11
      // Predicated region
      $region71: #{_lovasz_forward.2} parent=5 // pred_check
        %p434 = pneg %p433
      $region72: #{_lovasz_forward.2} parent=5 // pred_check_branch
        %436 = sbr.rel (%p434) target = $region74
      $region73: #{_lovasz_forward.2} parent=5 // pred_region
        %s437 = ssub.s32 %s11, 2
        // Predicated region
        $region75: #{_lovasz_forward.2} parent=73 // pred_check
          %p438 = pneg %p110
        $region76: #{_lovasz_forward.2} parent=73 // pred_check_branch
          %440 = sbr.rel (%p438) target = $region78
        $region77: #{_lovasz_forward.2} parent=73 // pred_region
          %s441 = sand.u32 %s95, 1
          %s442 = sand.u32 %s95, 1
          %s443 = smul.addr %s442, 64
          %s444 = scalar_lea.vmem [#allocation4], %s443
        $region78: #{_lovasz_forward.2} parent=73 // pred_fallthru
          _
      $region74: #{_lovasz_forward.2} parent=5 // pred_fallthru
        _
    $region6: #{_lovasz_forward.2} parent=1 // loop_footer
      %s15 = sadd.s32 1, %s11
    $region7: #{_lovasz_forward.2} parent=1 // loop_footer_branch
      %10 = sbr.rel target = $region3
    $region8: #{_lovasz_forward.2} parent=1 // loop_exit
      _
    %445 = vsyncpa [#allocation3], 1
    %s446 = scalar_lea.sflag [#allocation3], 1
    %447 = vsyncpa %s446, 1

// kernel: _lovasz_forward.3
$region0: #{_lovasz_forward.3}
  #allocation0 [shape = 'u32[]', space=smem, size = 0x4, offset = 0x4, fixed_abs, tag = 'smem constant byte address 0x4 - core index']
  #allocation1 [shape = 'u32[144,128]{1,0:T(1,128)}', space=vmem, size = 0x12000, scoped, tag = 'internal scratch']
  #allocation2 [shape = 'f32[4,1]{1,0:T(4,128)}', space=vmem, size = 0x800, scoped, tag = 'scratch operand']
  #allocation3 [shape = 'f32[4,1]{1,0:T(4,128)}', space=vmem, size = 0x800, scoped, tag = 'scratch operand']
  %s0 = inlined_call_operand.vmem [shape: f32[4,32,128], index: 0, kind: input, shape index: {}]
  %s1 = inlined_call_operand.vmem [shape: s8[4,32,128], index: 1, kind: input, shape index: {}]
  %s2 = inlined_call_operand.vmem [shape: f32[4,1], index: 2, kind: input, shape index: {}]
  %s3 = inlined_call_operand.vmem [shape: bf16[128,128], index: 3, kind: input, shape index: {}]
  %s4 = inlined_call_operand.hbm [shape: f32[1,1], index: 4, kind: output, shape index: {}]
  %s5 = sld [smem:[#allocation0]]
  $region34: #{_lovasz_forward.3} parent=0
    _
  %s7 = ssub.s32 1, %s5
  %s8 = scalar_select 0, %s7, %s5
  $region1: #{_lovasz_forward.3} parent=0
    #allocation4 [shape = 'u8[512]{0}', space=vmem, size = 0x400, scoped, tag = 'output window, operand 0, single buffered']
    #allocation5 [shape = 's32[1]{0}', space=sflag, size = 0x4, scoped, tag = 'scoped memory for _lovasz_forward.3']
    %9 = vsyncpa [#allocation5], 0
    // Predicated region
    $region2: #{_lovasz_forward.3} parent=1 // pred_check
      _
    $region3: #{_lovasz_forward.3} parent=1 // pred_check_branch
      %11 = sbr.rel (0) target = $region5
    $region4: #{_lovasz_forward.3} parent=1 // pred_region
      %s12 = ssub.s32 0, 0
      %s13 = smul.u32 4, %s12
      %p14 = scmp.lt.s32.totalorder %s13, 3
      %s15 = scalar_select %p14, %s13, 3
      %s16 = smul.addr %s15, 8
      %s17 = scalar_lea.vmem %s0, %s16
      %s18 = ssub.s32 0, 0
      %s19 = smul.u32 4, %s18
    $region5: #{_lovasz_forward.3} parent=1 // pred_fallthru
      _
    // Predicated region
    $region6: #{_lovasz_forward.3} parent=1 // pred_check
      _
    $region7: #{_lovasz_forward.3} parent=1 // pred_check_branch
      %21 = sbr.rel (0) target = $region9
    $region8: #{_lovasz_forward.3} parent=1 // pred_region
      %s22 = ssub.s32 0, 0
      %p23 = scmp.lt.s32.totalorder %s22, 0
      %s24 = scalar_select %p23, %s22, 0
      %s25 = smul.addr %s24, 8
      %s26 = scalar_lea.vmem %s1, %s25
      %s27 = ssub.s32 0, 0
    $region9: #{_lovasz_forward.3} parent=1 // pred_fallthru
      _
    // Predicated region
    $region10: #{_lovasz_forward.3} parent=1 // pred_check
      _
    $region11: #{_lovasz_forward.3} parent=1 // pred_check_branch
      %29 = sbr.rel (0) target = $region13
    $region12: #{_lovasz_forward.3} parent=1 // pred_region
      _
    $region13: #{_lovasz_forward.3} parent=1 // pred_fallthru
      _
    // Predicated region
    $region14: #{_lovasz_forward.3} parent=1 // pred_check
      _
    $region15: #{_lovasz_forward.3} parent=1 // pred_check_branch
      %31 = sbr.rel (0) target = $region17
    $region16: #{_lovasz_forward.3} parent=1 // pred_region
      _
    $region17: #{_lovasz_forward.3} parent=1 // pred_fallthru
      _
    %s32 = ssub.s32 0, 0
    %s33 = smul.u32 4, %s32
    %p34 = scmp.lt.s32.totalorder %s33, 3
    %s35 = scalar_select %p34, %s33, 3
    %s36 = smul.addr %s35, 8
    %s37 = scalar_lea.vmem %s0, %s36
    %s38 = ssub.s32 0, 0
    %p39 = scmp.lt.s32.totalorder %s38, 0
    %s40 = scalar_select %p39, %s38, 0
    %s41 = smul.addr %s40, 8
    %s42 = scalar_lea.vmem %s1, %s41
    %s43 = ssub.s32 0, 0
    %s44 = smul.u32 4, %s43
    %p45 = scmp.lt.s32.totalorder %s44, 3
    %s46 = scalar_select %p45, %s44, 3
    %s47 = smul.addr %s46, 8
    %s48 = scalar_lea.vmem %s0, %s47
    %s49 = ssub.s32 0, 0
    %s50 = smul.u32 4, %s49
    %s51 = ssub.s32 0, 0
    %p52 = scmp.lt.s32.totalorder %s51, 0
    %s53 = scalar_select %p52, %s51, 0
    %s54 = smul.addr %s53, 8
    %s55 = scalar_lea.vmem %s1, %s54
    %s56 = ssub.s32 0, 0
    %p58 = scmp.eq.s32.totalorder 0, 0
    // Predicated region
    $region18: #{_lovasz_forward.3} parent=1 // pred_check
      %p59 = pneg %p58
    $region19: #{_lovasz_forward.3} parent=1 // pred_check_branch
      %61 = sbr.rel (%p59) target = $region21
    $region20: #{_lovasz_forward.3} parent=1 // pred_region
      %vm62 = vcmask 3072
      %63 = vst.msk [vmem:[#allocation2] sm:$0xf] %vm62, 0.0
      %64 = vst.msk [vmem:[#allocation3] sm:$0xf] %vm62, 0.0
    $region21: #{_lovasz_forward.3} parent=1 // pred_fallthru
      _
    %v65 = vld [vmem:[%s48] sm:$0xff]
    %v66 = vld [vmem:[%s48 + $0x8] sm:$0xff]
    %v67 = vld [vmem:[%s48 + $0x10] sm:$0xff]
    %v68 = vld [vmem:[%s48 + $0x18] sm:$0xff]
    %v69 = vld [vmem:[%s48 + $0x20] sm:$0xff]
    %v70 = vld [vmem:[%s48 + $0x28] sm:$0xff]
    %v71 = vld [vmem:[%s48 + $0x30] sm:$0xff]
    %v72 = vld [vmem:[%s48 + $0x38] sm:$0xff]
    %v73 = vld [vmem:[%s48 + $0x40] sm:$0xff]
    %v74 = vld [vmem:[%s48 + $0x48] sm:$0xff]
    %v75 = vld [vmem:[%s48 + $0x50] sm:$0xff]
    %v76 = vld [vmem:[%s48 + $0x58] sm:$0xff]
    %v77 = vld [vmem:[%s48 + $0x60] sm:$0xff]
    %v78 = vld [vmem:[%s48 + $0x68] sm:$0xff]
    %v79 = vld [vmem:[%s48 + $0x70] sm:$0xff]
    %v80 = vld [vmem:[%s48 + $0x78] sm:$0xff]
    %v81 = vld [vmem:[%s55] sm:$0xff]
    %v82 = vld [vmem:[%s55 + $0x8] sm:$0xff]
    %v83 = vld [vmem:[%s55 + $0x10] sm:$0xff]
    %v84 = vld [vmem:[%s55 + $0x18] sm:$0xff]
    %v85 = vunpack.c.0.s8 %v81
    %v86 = vunpack.c.1.s8 %v81
    %v87 = vunpack.c.2.s8 %v81
    %v88 = vunpack.c.3.s8 %v81
    %v89 = vunpack.c.0.s8 %v82
    %v90 = vunpack.c.1.s8 %v82
    %v91 = vunpack.c.2.s8 %v82
    %v92 = vunpack.c.3.s8 %v82
    %v93 = vunpack.c.0.s8 %v83
    %v94 = vunpack.c.1.s8 %v83
    %v95 = vunpack.c.2.s8 %v83
    %v96 = vunpack.c.3.s8 %v83
    %v97 = vunpack.c.0.s8 %v84
    %v98 = vunpack.c.1.s8 %v84
    %v99 = vunpack.c.2.s8 %v84
    %v100 = vunpack.c.3.s8 %v84
    %v101 = vcvt.s32.f32 %v85
    %v102 = vcvt.s32.f32 %v86
    %v103 = vcvt.s32.f32 %v87
    %v104 = vcvt.s32.f32 %v88
    %v105 = vcvt.s32.f32 %v89
    %v106 = vcvt.s32.f32 %v90
    %v107 = vcvt.s32.f32 %v91
    %v108 = vcvt.s32.f32 %v92
    %v109 = vcvt.s32.f32 %v93
    %v110 = vcvt.s32.f32 %v94
    %v111 = vcvt.s32.f32 %v95
    %v112 = vcvt.s32.f32 %v96
    %v113 = vcvt.s32.f32 %v97
    %v114 = vcvt.s32.f32 %v98
    %v115 = vcvt.s32.f32 %v99
    %v116 = vcvt.s32.f32 %v100
    %v117 = vld [vmem:[%s2] sm:$0xf]
    %v120 = vunpack.c.l.s4 1966171168
    %v121 = vunpack.c.0.s8 %v120
    %v122 = vlaneseq
    %v123 = vshrl.u32 %v122, 7
    %v124 = vsub.s32 %v121, %v123
    %v125 = vrot.slane %v117, %v124
    %v126 = vcombine.high %v125, %v125
    %v128 = vunpack.c.l.s4 1966171168
    %v129 = vunpack.c.0.s8 %v128
    %v130 = vlaneseq
    %v131 = vshrl.u32 %v130, 7
    %v132 = vsub.s32 %v129, %v131
    %v133 = vrot.slane %v125, %v132
    %v135 = vunpack.c.l.s4 1966171168
    %v136 = vunpack.c.0.s8 %v135
    %v137 = vlaneseq
    %v138 = vshrl.u32 %v137, 7
    %v139 = vsub.s32 %v136, %v138
    %v140 = vrot.slane %v126, %v139
    %v141 = vcombine.high %v133, %v133
    %v142 = vcombine.high %v140, %v140
    %v143 = vpack.c.bf16 %v102, %v101
    %v144 = vpack.c.bf16 %v104, %v103
    %v145 = vpack.c.bf16 %v106, %v105
    %v146 = vpack.c.bf16 %v108, %v107
    %v147 = vpack.c.bf16 %v110, %v109
    %v148 = vpack.c.bf16 %v112, %v111
    %v149 = vpack.c.bf16 %v114, %v113
    %v150 = vpack.c.bf16 %v116, %v115
    %v151 = vld [vmem:[%s3] sm:$0xf]
    %v152 = vld [vmem:[%s3 + $0x4] sm:$0xf]
    %v153 = vld [vmem:[%s3 + $0x8] sm:$0xf]
    %v154 = vld [vmem:[%s3 + $0xc] sm:$0xf]
    %v155 = vld [vmem:[%s3 + $0x10] sm:$0xf]
    %v156 = vld [vmem:[%s3 + $0x14] sm:$0xf]
    %v157 = vld [vmem:[%s3 + $0x18] sm:$0xf]
    %v158 = vld [vmem:[%s3 + $0x1c] sm:$0xf]
    %v159 = vld [vmem:[%s3 + $0x20] sm:$0xf]
    %v160 = vld [vmem:[%s3 + $0x24] sm:$0xf]
    %v161 = vld [vmem:[%s3 + $0x28] sm:$0xf]
    %v162 = vld [vmem:[%s3 + $0x2c] sm:$0xf]
    %v163 = vld [vmem:[%s3 + $0x30] sm:$0xf]
    %v164 = vld [vmem:[%s3 + $0x34] sm:$0xf]
    %v165 = vld [vmem:[%s3 + $0x38] sm:$0xf]
    %v166 = vld [vmem:[%s3 + $0x3c] sm:$0xf]
    %v183 = vunpack.c.l.b16 %v151
    %v184 = vunpack.c.l.b16 %v152
    %v185 = vunpack.c.l.b16 %v153
    %v186 = vunpack.c.l.b16 %v154
    %v187 = vunpack.c.l.b16 %v155
    %v188 = vunpack.c.l.b16 %v156
    %v189 = vunpack.c.l.b16 %v157
    %v190 = vunpack.c.l.b16 %v158
    %v191 = vunpack.c.l.b16 %v159
    %v192 = vunpack.c.l.b16 %v160
    %v193 = vunpack.c.l.b16 %v161
    %v194 = vunpack.c.l.b16 %v162
    %v195 = vunpack.c.l.b16 %v163
    %v196 = vunpack.c.l.b16 %v164
    %v197 = vunpack.c.l.b16 %v165
    %v198 = vunpack.c.l.b16 %v166
    %v199 = vpack.c.b16 %v184, %v183
    %v200 = vpack.c.b16 %v186, %v185
    %v201 = vpack.c.b16 %v188, %v187
    %v202 = vpack.c.b16 %v190, %v189
    %v203 = vpack.c.b16 %v192, %v191
    %v204 = vpack.c.b16 %v194, %v193
    %v205 = vpack.c.b16 %v196, %v195
    %v206 = vpack.c.b16 %v198, %v197
    %215 = vmatprep.subr.bf16.mxu0 0
    %216 = vmatpush1.bf16.msra.mxu0 %v199
    %217 = vmatprep.subr.bf16.mxu0 0
    %218 = vmatpush1.bf16.msra.mxu0 %v200
    %219 = vmatprep.subr.bf16.mxu0 0
    %220 = vmatpush1.bf16.msra.mxu0 %v201
    %221 = vmatprep.subr.bf16.mxu0 0
    %222 = vmatpush1.bf16.msra.mxu0 %v202
    %223 = vmatprep.subr.bf16.mxu0 0
    %224 = vmatpush1.bf16.msra.mxu0 %v203
    %225 = vmatprep.subr.bf16.mxu0 0
    %226 = vmatpush1.bf16.msra.mxu0 %v204
    %227 = vmatprep.subr.bf16.mxu0 0
    %228 = vmatpush1.bf16.msra.mxu0 %v205
    %229 = vmatprep.subr.bf16.mxu0 0
    %230 = vmatpush1.bf16.msra.mxu0 %v206
    %231 = vmatprep.subr.bf16.mxu0 0
    %232 = vmatpush1.bf16.msra.mxu0 0
    %233 = vmatprep.subr.bf16.mxu0 0
    %234 = vmatpush1.bf16.msra.mxu0 0
    %235 = vmatprep.subr.bf16.mxu0 0
    %236 = vmatpush1.bf16.msra.mxu0 0
    %237 = vmatprep.subr.bf16.mxu0 0
    %238 = vmatpush1.bf16.msra.mxu0 0
    %239 = vmatprep.subr.bf16.mxu0 0
    %240 = vmatpush1.bf16.msra.mxu0 0
    %241 = vmatprep.subr.bf16.mxu0 0
    %242 = vmatpush1.bf16.msra.mxu0 0
    %243 = vmatprep.subr.bf16.mxu0 0
    %244 = vmatpush1.bf16.msra.mxu0 0
    %245 = vmatprep.subr.bf16.mxu0 0
    %246 = vmatpush1.bf16.msra.mxu0 0
    %247 = vmatprep.mubr.bf16.mxu0 0
    %248 = vmatmul.mubr.bf16.gmra.mrb[0].mxu0 %v143
    %v249 = vpop.f32.mrb[0].mxu0
    %v250 = vadd.f32 0.0, %v249
    %v251 = vpop.f32.mrb[0].mxu0
    %v252 = vpop.f32.mrb[0].mxu0
    %v253 = vadd.f32 0.0, %v252
    %v254 = vpop.f32.mrb[0].mxu0
    %255 = vmatprep.mubr.bf16.mxu0 0
    %256 = vmatmul.mubr.bf16.gmra.mrb[0].mxu0 %v144
    %v257 = vpop.f32.mrb[0].mxu0
    %v258 = vadd.f32 0.0, %v257
    %v259 = vpop.f32.mrb[0].mxu0
    %v260 = vpop.f32.mrb[0].mxu0
    %v261 = vadd.f32 0.0, %v260
    %v262 = vpop.f32.mrb[0].mxu0
    %263 = vmatprep.mubr.bf16.mxu0 0
    %264 = vmatmul.mubr.bf16.gmra.mrb[0].mxu0 %v145
    %v265 = vpop.f32.mrb[0].mxu0
    %v266 = vadd.f32 0.0, %v265
    %v267 = vpop.f32.mrb[0].mxu0
    %v268 = vpop.f32.mrb[0].mxu0
    %v269 = vadd.f32 0.0, %v268
    %v270 = vpop.f32.mrb[0].mxu0
    %271 = vmatprep.mubr.bf16.mxu0 0
    %272 = vmatmul.mubr.bf16.gmra.mrb[0].mxu0 %v146
    %v273 = vpop.f32.mrb[0].mxu0
    %v274 = vadd.f32 0.0, %v273
    %v275 = vpop.f32.mrb[0].mxu0
    %v276 = vpop.f32.mrb[0].mxu0
    %v277 = vadd.f32 0.0, %v276
    %v278 = vpop.f32.mrb[0].mxu0
    %279 = vmatprep.mubr.bf16.mxu0 0
    %280 = vmatmul.mubr.bf16.gmra.mrb[0].mxu0 %v147
    %v281 = vpop.f32.mrb[0].mxu0
    %v282 = vadd.f32 0.0, %v281
    %v283 = vpop.f32.mrb[0].mxu0
    %v284 = vpop.f32.mrb[0].mxu0
    %v285 = vadd.f32 0.0, %v284
    %v286 = vpop.f32.mrb[0].mxu0
    %287 = vmatprep.mubr.bf16.mxu0 0
    %288 = vmatmul.mubr.bf16.gmra.mrb[0].mxu0 %v148
    %v289 = vpop.f32.mrb[0].mxu0
    %v290 = vadd.f32 0.0, %v289
    %v291 = vpop.f32.mrb[0].mxu0
    %v292 = vpop.f32.mrb[0].mxu0
    %v293 = vadd.f32 0.0, %v292
    %v294 = vpop.f32.mrb[0].mxu0
    %295 = vmatprep.mubr.bf16.mxu0 0
    %296 = vmatmul.mubr.bf16.gmra.mrb[0].mxu0 %v149
    %v297 = vpop.f32.mrb[0].mxu0
    %v298 = vadd.f32 0.0, %v297
    %v299 = vpop.f32.mrb[0].mxu0
    %v300 = vpop.f32.mrb[0].mxu0
    %v301 = vadd.f32 0.0, %v300
    %v302 = vpop.f32.mrb[0].mxu0
    %303 = vmatprep.mubr.bf16.mxu0 0
    %304 = vmatmul.mubr.bf16.gmra.mrb[0].mxu0 %v150
    %v305 = vpop.f32.mrb[0].mxu0
    %v306 = vadd.f32 0.0, %v305
    %v307 = vpop.f32.mrb[0].mxu0
    %v308 = vpop.f32.mrb[0].mxu0
    %v309 = vadd.f32 0.0, %v308
    %v310 = vpop.f32.mrb[0].mxu0
    %311 = vdwg.mxu0
    %312 = vadd.xlane.f32.xlu0 %v101
    %v313 = vpop.xlane.xlu0 %312
    %314 = vadd.xlane.f32.xlu0 %v102
    %v315 = vpop.xlane.xlu0 %314
    %316 = vadd.xlane.f32.xlu0 %v103
    %v317 = vpop.xlane.xlu0 %316
    %318 = vadd.xlane.f32.xlu0 %v104
    %v319 = vpop.xlane.xlu0 %318
    %320 = vadd.xlane.f32.xlu0 %v105
    %v321 = vpop.xlane.xlu0 %320
    %322 = vadd.xlane.f32.xlu0 %v106
    %v323 = vpop.xlane.xlu0 %322
    %324 = vadd.xlane.f32.xlu0 %v107
    %v325 = vpop.xlane.xlu0 %324
    %326 = vadd.xlane.f32.xlu0 %v108
    %v327 = vpop.xlane.xlu0 %326
    %328 = vadd.xlane.f32.xlu0 %v109
    %v329 = vpop.xlane.xlu0 %328
    %330 = vadd.xlane.f32.xlu0 %v110
    %v331 = vpop.xlane.xlu0 %330
    %332 = vadd.xlane.f32.xlu0 %v111
    %v333 = vpop.xlane.xlu0 %332
    %334 = vadd.xlane.f32.xlu0 %v112
    %v335 = vpop.xlane.xlu0 %334
    %336 = vadd.xlane.f32.xlu0 %v113
    %v337 = vpop.xlane.xlu0 %336
    %338 = vadd.xlane.f32.xlu0 %v114
    %v339 = vpop.xlane.xlu0 %338
    %340 = vadd.xlane.f32.xlu0 %v115
    %v341 = vpop.xlane.xlu0 %340
    %342 = vadd.xlane.f32.xlu0 %v116
    %v343 = vpop.xlane.xlu0 %342
    %v344 = vlaneseq
    %v345 = vshrl.u32 %v344, 7
    %v346 = vadd.s32 %v345, 8
    %v347 = vadd.s32 %v345, 16
    %v348 = vadd.s32 %v345, 24
    %v349 = vlaneseq
    %v350 = vand.u32 %v349, 127
    %vm351 = vcmp.gt.s32.totalorder %v345, %v350
    %vm352 = vcmp.gt.s32.totalorder %v346, %v350
    %vm353 = vcmp.gt.s32.totalorder %v347, %v350
    %vm354 = vcmp.gt.s32.totalorder %v348, %v350
    %v355 = vsel %vm351, 1, 0
    %v356 = vsel %vm352, 1, 0
    %v357 = vsel %vm353, 1, 0
    %v358 = vsel %vm354, 1, 0
    %v359 = vcvt.s32.f32 %v355
    %v360 = vcvt.s32.f32 %v356
    %v361 = vcvt.s32.f32 %v357
    %v362 = vcvt.s32.f32 %v358
    %v363 = vmul.f32 %v313, %v359
    %v364 = vmul.f32 %v315, %v360
    %v365 = vmul.f32 %v317, %v361
    %v366 = vmul.f32 %v319, %v362
    %v367 = vmul.f32 %v321, %v359
    %v368 = vmul.f32 %v323, %v360
    %v369 = vmul.f32 %v325, %v361
    %v370 = vmul.f32 %v327, %v362
    %v371 = vmul.f32 %v329, %v359
    %v372 = vmul.f32 %v331, %v360
    %v373 = vmul.f32 %v333, %v361
    %v374 = vmul.f32 %v335, %v362
    %v375 = vmul.f32 %v337, %v359
    %v376 = vmul.f32 %v339, %v360
    %v377 = vmul.f32 %v341, %v361
    %v378 = vmul.f32 %v343, %v362
    %vm379 = vcmask 261120
    %v380 = vsel %vm379, %v363, 0.0
    %v381 = vsel %vm379, %v364, 0.0
    %v382 = vadd.f32 %v380, %v381
    %v383 = vsel %vm379, %v365, 0.0
    %v384 = vadd.f32 %v382, %v383
    %v385 = vsel %vm379, %v366, 0.0
    %v386 = vadd.f32 %v384, %v385
    %v387 = vrot.slane %v386, 4
    %v388 = vadd.f32 %v386, %v387
    %v389 = vrot.slane %v388, 2
    %v390 = vadd.f32 %v388, %v389
    %v391 = vrot.slane %v390, 1
    %v392 = vadd.f32 %v390, %v391
    %v393 = vsel %vm379, %v367, 0.0
    %v394 = vsel %vm379, %v368, 0.0
    %v395 = vadd.f32 %v393, %v394
    %v396 = vsel %vm379, %v369, 0.0
    %v397 = vadd.f32 %v395, %v396
    %v398 = vsel %vm379, %v370, 0.0
    %v399 = vadd.f32 %v397, %v398
    %v400 = vrot.slane %v399, 4
    %v401 = vadd.f32 %v399, %v400
    %v402 = vrot.slane %v401, 2
    %v403 = vadd.f32 %v401, %v402
    %v404 = vrot.slane %v403, 1
    %v405 = vadd.f32 %v403, %v404
    %v406 = vsel %vm379, %v371, 0.0
    %v407 = vsel %vm379, %v372, 0.0
    %v408 = vadd.f32 %v406, %v407
    %v409 = vsel %vm379, %v373, 0.0
    %v410 = vadd.f32 %v408, %v409
    %v411 = vsel %vm379, %v374, 0.0
    %v412 = vadd.f32 %v410, %v411
    %v413 = vrot.slane %v412, 4
    %v414 = vadd.f32 %v412, %v413
    %v415 = vrot.slane %v414, 2
    %v416 = vadd.f32 %v414, %v415
    %v417 = vrot.slane %v416, 1
    %v418 = vadd.f32 %v416, %v417
    %v419 = vsel %vm379, %v375, 0.0
    %v420 = vsel %vm379, %v376, 0.0
    %v421 = vadd.f32 %v419, %v420
    %v422 = vsel %vm379, %v377, 0.0
    %v423 = vadd.f32 %v421, %v422
    %v424 = vsel %vm379, %v378, 0.0
    %v425 = vadd.f32 %v423, %v424
    %v426 = vrot.slane %v425, 4
    %v427 = vadd.f32 %v425, %v426
    %v428 = vrot.slane %v427, 2
    %v429 = vadd.f32 %v427, %v428
    %v430 = vrot.slane %v429, 1
    %v431 = vadd.f32 %v429, %v430
    %v432 = vld [vmem:[#allocation2] sm:$0xf]
    %v435 = vunpack.c.l.s4 1966171168
    %v436 = vunpack.c.0.s8 %v435
    %v437 = vlaneseq
    %v438 = vshrl.u32 %v437, 7
    %v439 = vsub.s32 %v436, %v438
    %v440 = vrot.slane %v432, %v439
    %v441 = vcombine.high %v440, %v440
    %v443 = vunpack.c.l.s4 1966171168
    %v444 = vunpack.c.0.s8 %v443
    %v445 = vlaneseq
    %v446 = vshrl.u32 %v445, 7
    %v447 = vsub.s32 %v444, %v446
    %v448 = vrot.slane %v440, %v447
    %v450 = vunpack.c.l.s4 1966171168
    %v451 = vunpack.c.0.s8 %v450
    %v452 = vlaneseq
    %v453 = vshrl.u32 %v452, 7
    %v454 = vsub.s32 %v451, %v453
    %v455 = vrot.slane %v441, %v454
    %v456 = vcombine.high %v448, %v448
    %v457 = vcombine.high %v455, %v455
    %v458 = vlaneseq
    %v459 = vshrl.u32 %v458, 7
    %v460 = vsub.s32 0, %v459
    %v461 = vrot.slane %v448, %v460
    %v462 = vlaneseq
    %v463 = vshrl.u32 %v462, 7
    %v464 = vsub.s32 0, %v463
    %v465 = vrot.slane %v455, %v464
    %v466 = vlaneseq
    %v467 = vshrl.u32 %v466, 7
    %v468 = vsub.s32 0, %v467
    %v469 = vrot.slane %v456, %v468
    %v470 = vlaneseq
    %v471 = vshrl.u32 %v470, 7
    %v472 = vsub.s32 0, %v471
    %v473 = vrot.slane %v457, %v472
    %474 = vset.pattern.permute.xlu0 0
    %475 = vperm.xlu0 %474, %v461
    %v476 = vpop.permute.xlu0 %475
    %478 = vset.pattern.permute.xlu0 0
    %479 = vperm.xlu0 %478, %v465
    %v480 = vpop.permute.xlu0 %479
    %482 = vset.pattern.permute.xlu0 0
    %483 = vperm.xlu0 %482, %v469
    %v484 = vpop.permute.xlu0 %483
    %486 = vset.pattern.permute.xlu0 0
    %487 = vperm.xlu0 %486, %v473
    %v488 = vpop.permute.xlu0 %487
    %v490 = vadd.f32 %v476, %v250
    %v491 = vadd.f32 %v476, %v253
    %v492 = vadd.f32 %v476, %v258
    %v493 = vadd.f32 %v476, %v261
    %v494 = vadd.f32 %v480, %v266
    %v495 = vadd.f32 %v480, %v269
    %v496 = vadd.f32 %v480, %v274
    %v497 = vadd.f32 %v480, %v277
    %v498 = vadd.f32 %v484, %v282
    %v499 = vadd.f32 %v484, %v285
    %v500 = vadd.f32 %v484, %v290
    %v501 = vadd.f32 %v484, %v293
    %v502 = vadd.f32 %v488, %v298
    %v503 = vadd.f32 %v488, %v301
    %v504 = vadd.f32 %v488, %v306
    %v505 = vadd.f32 %v488, %v309
    %507 = vbcast.lane.b32.xlu0 %v392, 256
    %v508 = vpop.permute.xlu0 %507
    %s510 = sor.u32 256, 8
    %511 = vbcast.lane.b32.xlu0 %v392, %s510
    %v512 = vpop.permute.xlu0 %511
    %s514 = sor.u32 256, 16
    %515 = vbcast.lane.b32.xlu0 %v392, %s514
    %v516 = vpop.permute.xlu0 %515
    %s518 = sor.u32 256, 24
    %519 = vbcast.lane.b32.xlu0 %v392, %s518
    %v520 = vpop.permute.xlu0 %519
    %522 = vbcast.lane.b32.xlu0 %v405, 256
    %v523 = vpop.permute.xlu0 %522
    %s525 = sor.u32 256, 8
    %526 = vbcast.lane.b32.xlu0 %v405, %s525
    %v527 = vpop.permute.xlu0 %526
    %s529 = sor.u32 256, 16
    %530 = vbcast.lane.b32.xlu0 %v405, %s529
    %v531 = vpop.permute.xlu0 %530
    %s533 = sor.u32 256, 24
    %534 = vbcast.lane.b32.xlu0 %v405, %s533
    %v535 = vpop.permute.xlu0 %534
    %537 = vbcast.lane.b32.xlu0 %v418, 256
    %v538 = vpop.permute.xlu0 %537
    %s540 = sor.u32 256, 8
    %541 = vbcast.lane.b32.xlu0 %v418, %s540
    %v542 = vpop.permute.xlu0 %541
    %s544 = sor.u32 256, 16
    %545 = vbcast.lane.b32.xlu0 %v418, %s544
    %v546 = vpop.permute.xlu0 %545
    %s548 = sor.u32 256, 24
    %549 = vbcast.lane.b32.xlu0 %v418, %s548
    %v550 = vpop.permute.xlu0 %549
    %552 = vbcast.lane.b32.xlu0 %v431, 256
    %v553 = vpop.permute.xlu0 %552
    %s555 = sor.u32 256, 8
    %556 = vbcast.lane.b32.xlu0 %v431, %s555
    %v557 = vpop.permute.xlu0 %556
    %s559 = sor.u32 256, 16
    %560 = vbcast.lane.b32.xlu0 %v431, %s559
    %v561 = vpop.permute.xlu0 %560
    %s563 = sor.u32 256, 24
    %564 = vbcast.lane.b32.xlu0 %v431, %s563
    %v565 = vpop.permute.xlu0 %564
    %v566 = vadd.f32 %v490, %v508
    %v567 = vadd.f32 %v491, %v512
    %v568 = vadd.f32 %v492, %v516
    %v569 = vadd.f32 %v493, %v520
    %v570 = vadd.f32 %v494, %v523
    %v571 = vadd.f32 %v495, %v527
    %v572 = vadd.f32 %v496, %v531
    %v573 = vadd.f32 %v497, %v535
    %v574 = vadd.f32 %v498, %v538
    %v575 = vadd.f32 %v499, %v542
    %v576 = vadd.f32 %v500, %v546
    %v577 = vadd.f32 %v501, %v550
    %v578 = vadd.f32 %v502, %v553
    %v579 = vadd.f32 %v503, %v557
    %v580 = vadd.f32 %v504, %v561
    %v581 = vadd.f32 %v505, %v565
    %s582 = sadd.s32 0, 1
    %s583 = smul.u32 %s582, 4096
    %v584 = vmul.u32 %v345, 128
    %v585 = vmul.u32 %v346, 128
    %v586 = vmul.u32 %v347, 128
    %v587 = vmul.u32 %v348, 128
    %v588 = vadd.s32 %v584, %v350
    %v589 = vadd.s32 %v585, %v350
    %v590 = vadd.s32 %v586, %v350
    %v591 = vadd.s32 %v587, %v350
    %v592 = vstv %s583
    %v593 = vsub.s32 %v592, %v588
    %v594 = vsub.s32 %v592, %v589
    %v595 = vsub.s32 %v592, %v590
    %v596 = vsub.s32 %v592, %v591
    %v597 = vcvt.s32.f32 %v593
    %v598 = vcvt.s32.f32 %v594
    %v599 = vcvt.s32.f32 %v595
    %v600 = vcvt.s32.f32 %v596
    %v601 = vlaneseq
    %v602 = vshrl.u32 %v601, 7
    %v603 = vsub.s32 0, %v602
    %v604 = vrot.slane %v133, %v603
    %v605 = vlaneseq
    %v606 = vshrl.u32 %v605, 7
    %v607 = vsub.s32 0, %v606
    %v608 = vrot.slane %v140, %v607
    %v609 = vlaneseq
    %v610 = vshrl.u32 %v609, 7
    %v611 = vsub.s32 0, %v610
    %v612 = vrot.slane %v141, %v611
    %v613 = vlaneseq
    %v614 = vshrl.u32 %v613, 7
    %v615 = vsub.s32 0, %v614
    %v616 = vrot.slane %v142, %v615
    %617 = vset.pattern.permute.xlu0 0
    %618 = vperm.xlu0 %617, %v604
    %v619 = vpop.permute.xlu0 %618
    %621 = vset.pattern.permute.xlu0 0
    %622 = vperm.xlu0 %621, %v608
    %v623 = vpop.permute.xlu0 %622
    %625 = vset.pattern.permute.xlu0 0
    %626 = vperm.xlu0 %625, %v612
    %v627 = vpop.permute.xlu0 %626
    %629 = vset.pattern.permute.xlu0 0
    %630 = vperm.xlu0 %629, %v616
    %v631 = vpop.permute.xlu0 %630
    %v633 = vsub.f32 %v619, %v566
    %v634 = vsub.f32 %v619, %v567
    %v635 = vsub.f32 %v619, %v568
    %v636 = vsub.f32 %v619, %v569
    %v637 = vsub.f32 %v623, %v570
    %v638 = vsub.f32 %v623, %v571
    %v639 = vsub.f32 %v623, %v572
    %v640 = vsub.f32 %v623, %v573
    %v641 = vsub.f32 %v627, %v574
    %v642 = vsub.f32 %v627, %v575
    %v643 = vsub.f32 %v627, %v576
    %v644 = vsub.f32 %v627, %v577
    %v645 = vsub.f32 %v631, %v578
    %v646 = vsub.f32 %v631, %v579
    %v647 = vsub.f32 %v631, %v580
    %v648 = vsub.f32 %v631, %v581
    %v649 = vadd.f32 %v619, %v597
    %v650 = vadd.f32 %v619, %v598
    %v651 = vadd.f32 %v619, %v599
    %v652 = vadd.f32 %v619, %v600
    %v653 = vadd.f32 %v623, %v597
    %v654 = vadd.f32 %v623, %v598
    %v655 = vadd.f32 %v623, %v599
    %v656 = vadd.f32 %v623, %v600
    %v657 = vadd.f32 %v627, %v597
    %v658 = vadd.f32 %v627, %v598
    %v659 = vadd.f32 %v627, %v599
    %v660 = vadd.f32 %v627, %v600
    %v661 = vadd.f32 %v631, %v597
    %v662 = vadd.f32 %v631, %v598
    %v663 = vadd.f32 %v631, %v599
    %v664 = vadd.f32 %v631, %v600
    %v665 = vsub.f32 %v649, %v566
    %v666 = vsub.f32 %v650, %v567
    %v667 = vsub.f32 %v651, %v568
    %v668 = vsub.f32 %v652, %v569
    %v669 = vsub.f32 %v653, %v570
    %v670 = vsub.f32 %v654, %v571
    %v671 = vsub.f32 %v655, %v572
    %v672 = vsub.f32 %v656, %v573
    %v673 = vsub.f32 %v657, %v574
    %v674 = vsub.f32 %v658, %v575
    %v675 = vsub.f32 %v659, %v576
    %v676 = vsub.f32 %v660, %v577
    %v677 = vsub.f32 %v661, %v578
    %v678 = vsub.f32 %v662, %v579
    %v679 = vsub.f32 %v663, %v580
    %v680 = vsub.f32 %v664, %v581
    %v681 = vrcp.pop %v665
    %v682 = vmul.f32 %v633, %v681
    %v683 = vrcp.pop %v666
    %v684 = vmul.f32 %v634, %v683
    %v685 = vrcp.pop %v667
    %v686 = vmul.f32 %v635, %v685
    %v687 = vrcp.pop %v668
    %v688 = vmul.f32 %v636, %v687
    %v689 = vrcp.pop %v669
    %v690 = vmul.f32 %v637, %v689
    %v691 = vrcp.pop %v670
    %v692 = vmul.f32 %v638, %v691
    %v693 = vrcp.pop %v671
    %v694 = vmul.f32 %v639, %v693
    %v695 = vrcp.pop %v672
    %v696 = vmul.f32 %v640, %v695
    %v697 = vrcp.pop %v673
    %v698 = vmul.f32 %v641, %v697
    %v699 = vrcp.pop %v674
    %v700 = vmul.f32 %v642, %v699
    %v701 = vrcp.pop %v675
    %v702 = vmul.f32 %v643, %v701
    %v703 = vrcp.pop %v676
    %v704 = vmul.f32 %v644, %v703
    %v705 = vrcp.pop %v677
    %v706 = vmul.f32 %v645, %v705
    %v707 = vrcp.pop %v678
    %v708 = vmul.f32 %v646, %v707
    %v709 = vrcp.pop %v679
    %v710 = vmul.f32 %v647, %v709
    %v711 = vrcp.pop %v680
    %v712 = vmul.f32 %v648, %v711
    %v713 = vsub.f32 1.0, %v682
    %v714 = vsub.f32 1.0, %v684
    %v715 = vsub.f32 1.0, %v686
    %v716 = vsub.f32 1.0, %v688
    %v717 = vsub.f32 1.0, %v690
    %v718 = vsub.f32 1.0, %v692
    %v719 = vsub.f32 1.0, %v694
    %v720 = vsub.f32 1.0, %v696
    %v721 = vsub.f32 1.0, %v698
    %v722 = vsub.f32 1.0, %v700
    %v723 = vsub.f32 1.0, %v702
    %v724 = vsub.f32 1.0, %v704
    %v725 = vsub.f32 1.0, %v706
    %v726 = vsub.f32 1.0, %v708
    %v727 = vsub.f32 1.0, %v710
    %v728 = vsub.f32 1.0, %v712
    %v729 = vsub.f32 %v566, %v101
    %v730 = vsub.f32 %v567, %v102
    %v731 = vsub.f32 %v568, %v103
    %v732 = vsub.f32 %v569, %v104
    %v733 = vsub.f32 %v570, %v105
    %v734 = vsub.f32 %v571, %v106
    %v735 = vsub.f32 %v572, %v107
    %v736 = vsub.f32 %v573, %v108
    %v737 = vsub.f32 %v574, %v109
    %v738 = vsub.f32 %v575, %v110
    %v739 = vsub.f32 %v576, %v111
    %v740 = vsub.f32 %v577, %v112
    %v741 = vsub.f32 %v578, %v113
    %v742 = vsub.f32 %v579, %v114
    %v743 = vsub.f32 %v580, %v115
    %v744 = vsub.f32 %v581, %v116
    %vm745 = vcmp.le.f32.partialorder %v597, 1.0
    %vm746 = vcmp.le.f32.partialorder %v598, 1.0
    %vm747 = vcmp.le.f32.partialorder %v599, 1.0
    %vm748 = vcmp.le.f32.partialorder %v600, 1.0
    %v749 = vsub.f32 %v619, %v729
    %v750 = vsub.f32 %v619, %v730
    %v751 = vsub.f32 %v619, %v731
    %v752 = vsub.f32 %v619, %v732
    %v753 = vsub.f32 %v623, %v733
    %v754 = vsub.f32 %v623, %v734
    %v755 = vsub.f32 %v623, %v735
    %v756 = vsub.f32 %v623, %v736
    %v757 = vsub.f32 %v627, %v737
    %v758 = vsub.f32 %v627, %v738
    %v759 = vsub.f32 %v627, %v739
    %v760 = vsub.f32 %v627, %v740
    %v761 = vsub.f32 %v631, %v741
    %v762 = vsub.f32 %v631, %v742
    %v763 = vsub.f32 %v631, %v743
    %v764 = vsub.f32 %v631, %v744
    %v765 = vsub.f32 %v597, 1.0
    %v766 = vsub.f32 %v598, 1.0
    %v767 = vsub.f32 %v599, 1.0
    %v768 = vsub.f32 %v600, 1.0
    %v769 = vadd.f32 %v619, %v765
    %v770 = vadd.f32 %v619, %v766
    %v771 = vadd.f32 %v619, %v767
    %v772 = vadd.f32 %v619, %v768
    %v773 = vadd.f32 %v623, %v765
    %v774 = vadd.f32 %v623, %v766
    %v775 = vadd.f32 %v623, %v767
    %v776 = vadd.f32 %v623, %v768
    %v777 = vadd.f32 %v627, %v765
    %v778 = vadd.f32 %v627, %v766
    %v779 = vadd.f32 %v627, %v767
    %v780 = vadd.f32 %v627, %v768
    %v781 = vadd.f32 %v631, %v765
    %v782 = vadd.f32 %v631, %v766
    %v783 = vadd.f32 %v631, %v767
    %v784 = vadd.f32 %v631, %v768
    %v785 = vsub.f32 %v769, %v729
    %v786 = vsub.f32 %v770, %v730
    %v787 = vsub.f32 %v771, %v731
    %v788 = vsub.f32 %v772, %v732
    %v789 = vsub.f32 %v773, %v733
    %v790 = vsub.f32 %v774, %v734
    %v791 = vsub.f32 %v775, %v735
    %v792 = vsub.f32 %v776, %v736
    %v793 = vsub.f32 %v777, %v737
    %v794 = vsub.f32 %v778, %v738
    %v795 = vsub.f32 %v779, %v739
    %v796 = vsub.f32 %v780, %v740
    %v797 = vsub.f32 %v781, %v741
    %v798 = vsub.f32 %v782, %v742
    %v799 = vsub.f32 %v783, %v743
    %v800 = vsub.f32 %v784, %v744
    %v801 = vrcp.pop %v785
    %v802 = vmul.f32 %v749, %v801
    %v803 = vrcp.pop %v786
    %v804 = vmul.f32 %v750, %v803
    %v805 = vrcp.pop %v787
    %v806 = vmul.f32 %v751, %v805
    %v807 = vrcp.pop %v788
    %v808 = vmul.f32 %v752, %v807
    %v809 = vrcp.pop %v789
    %v810 = vmul.f32 %v753, %v809
    %v811 = vrcp.pop %v790
    %v812 = vmul.f32 %v754, %v811
    %v813 = vrcp.pop %v791
    %v814 = vmul.f32 %v755, %v813
    %v815 = vrcp.pop %v792
    %v816 = vmul.f32 %v756, %v815
    %v817 = vrcp.pop %v793
    %v818 = vmul.f32 %v757, %v817
    %v819 = vrcp.pop %v794
    %v820 = vmul.f32 %v758, %v819
    %v821 = vrcp.pop %v795
    %v822 = vmul.f32 %v759, %v821
    %v823 = vrcp.pop %v796
    %v824 = vmul.f32 %v760, %v823
    %v825 = vrcp.pop %v797
    %v826 = vmul.f32 %v761, %v825
    %v827 = vrcp.pop %v798
    %v828 = vmul.f32 %v762, %v827
    %v829 = vrcp.pop %v799
    %v830 = vmul.f32 %v763, %v829
    %v831 = vrcp.pop %v800
    %v832 = vmul.f32 %v764, %v831
    %v833 = vsub.f32 1.0, %v802
    %v834 = vsub.f32 1.0, %v804
    %v835 = vsub.f32 1.0, %v806
    %v836 = vsub.f32 1.0, %v808
    %v837 = vsub.f32 1.0, %v810
    %v838 = vsub.f32 1.0, %v812
    %v839 = vsub.f32 1.0, %v814
    %v840 = vsub.f32 1.0, %v816
    %v841 = vsub.f32 1.0, %v818
    %v842 = vsub.f32 1.0, %v820
    %v843 = vsub.f32 1.0, %v822
    %v844 = vsub.f32 1.0, %v824
    %v845 = vsub.f32 1.0, %v826
    %v846 = vsub.f32 1.0, %v828
    %v847 = vsub.f32 1.0, %v830
    %v848 = vsub.f32 1.0, %v832
    %v849 = vsel %vm745, 0.0, %v833
    %v850 = vsel %vm746, 0.0, %v834
    %v851 = vsel %vm747, 0.0, %v835
    %v852 = vsel %vm748, 0.0, %v836
    %v853 = vsel %vm745, 0.0, %v837
    %v854 = vsel %vm746, 0.0, %v838
    %v855 = vsel %vm747, 0.0, %v839
    %v856 = vsel %vm748, 0.0, %v840
    %v857 = vsel %vm745, 0.0, %v841
    %v858 = vsel %vm746, 0.0, %v842
    %v859 = vsel %vm747, 0.0, %v843
    %v860 = vsel %vm748, 0.0, %v844
    %v861 = vsel %vm745, 0.0, %v845
    %v862 = vsel %vm746, 0.0, %v846
    %v863 = vsel %vm747, 0.0, %v847
    %v864 = vsel %vm748, 0.0, %v848
    %v865 = vsub.f32 %v713, %v849
    %v866 = vsub.f32 %v714, %v850
    %v867 = vsub.f32 %v715, %v851
    %v868 = vsub.f32 %v716, %v852
    %v869 = vsub.f32 %v717, %v853
    %v870 = vsub.f32 %v718, %v854
    %v871 = vsub.f32 %v719, %v855
    %v872 = vsub.f32 %v720, %v856
    %v873 = vsub.f32 %v721, %v857
    %v874 = vsub.f32 %v722, %v858
    %v875 = vsub.f32 %v723, %v859
    %v876 = vsub.f32 %v724, %v860
    %v877 = vsub.f32 %v725, %v861
    %v878 = vsub.f32 %v726, %v862
    %v879 = vsub.f32 %v727, %v863
    %v880 = vsub.f32 %v728, %v864
    %v881 = vld [vmem:[#allocation3] sm:$0xf]
    %v882 = vmul.f32 %v65, %v865
    %v883 = vmul.f32 %v66, %v866
    %v884 = vmul.f32 %v67, %v867
    %v885 = vmul.f32 %v68, %v868
    %v886 = vmul.f32 %v69, %v869
    %v887 = vmul.f32 %v70, %v870
    %v888 = vmul.f32 %v71, %v871
    %v889 = vmul.f32 %v72, %v872
    %v890 = vmul.f32 %v73, %v873
    %v891 = vmul.f32 %v74, %v874
    %v892 = vmul.f32 %v75, %v875
    %v893 = vmul.f32 %v76, %v876
    %v894 = vmul.f32 %v77, %v877
    %v895 = vmul.f32 %v78, %v878
    %v896 = vmul.f32 %v79, %v879
    %v897 = vmul.f32 %v80, %v880
    %898 = vadd.xlane.f32.xlu0 %v882
    %v899 = vpop.xlane.xlu0 %898
    %900 = vadd.xlane.f32.xlu0 %v883
    %v901 = vpop.xlane.xlu0 %900
    %902 = vadd.xlane.f32.xlu0 %v884
    %v903 = vpop.xlane.xlu0 %902
    %904 = vadd.xlane.f32.xlu0 %v885
    %v905 = vpop.xlane.xlu0 %904
    %906 = vadd.xlane.f32.xlu0 %v886
    %v907 = vpop.xlane.xlu0 %906
    %908 = vadd.xlane.f32.xlu0 %v887
    %v909 = vpop.xlane.xlu0 %908
    %910 = vadd.xlane.f32.xlu0 %v888
    %v911 = vpop.xlane.xlu0 %910
    %912 = vadd.xlane.f32.xlu0 %v889
    %v913 = vpop.xlane.xlu0 %912
    %914 = vadd.xlane.f32.xlu0 %v890
    %v915 = vpop.xlane.xlu0 %914
    %916 = vadd.xlane.f32.xlu0 %v891
    %v917 = vpop.xlane.xlu0 %916
    %918 = vadd.xlane.f32.xlu0 %v892
    %v919 = vpop.xlane.xlu0 %918
    %920 = vadd.xlane.f32.xlu0 %v893
    %v921 = vpop.xlane.xlu0 %920
    %922 = vadd.xlane.f32.xlu0 %v894
    %v923 = vpop.xlane.xlu0 %922
    %924 = vadd.xlane.f32.xlu0 %v895
    %v925 = vpop.xlane.xlu0 %924
    %926 = vadd.xlane.f32.xlu0 %v896
    %v927 = vpop.xlane.xlu0 %926
    %928 = vadd.xlane.f32.xlu0 %v897
    %v929 = vpop.xlane.xlu0 %928
    %v946 = vlaneseq
    %v947 = vshrl.u32 %v946, 7
    %v948 = vsub.s32 %v350, %v947
    %v949 = vrot.slane %v899, %v948
    %v950 = vadd.s32 %v350, 4294967288
    %v951 = vlaneseq
    %v952 = vshrl.u32 %v951, 7
    %v953 = vsub.s32 %v950, %v952
    %v954 = vrot.slane %v901, %v953
    %vm955 = vcmask 130112
    %v956 = vsel %vm955, %v954, %v949
    %v957 = vadd.s32 %v350, 4294967280
    %v958 = vlaneseq
    %v959 = vshrl.u32 %v958, 7
    %v960 = vsub.s32 %v957, %v959
    %v961 = vrot.slane %v903, %v960
    %vm962 = vcmask 195712
    %v963 = vsel %vm962, %v961, %v956
    %v964 = vadd.s32 %v350, 4294967272
    %v965 = vlaneseq
    %v966 = vshrl.u32 %v965, 7
    %v967 = vsub.s32 %v964, %v966
    %v968 = vrot.slane %v905, %v967
    %vm969 = vcmask 261312
    %v970 = vsel %vm969, %v968, %v963
    %v971 = vlaneseq
    %v972 = vshrl.u32 %v971, 7
    %v973 = vsub.s32 %v350, %v972
    %v974 = vrot.slane %v907, %v973
    %v975 = vlaneseq
    %v976 = vshrl.u32 %v975, 7
    %v977 = vsub.s32 %v950, %v976
    %v978 = vrot.slane %v909, %v977
    %v979 = vsel %vm955, %v978, %v974
    %v980 = vlaneseq
    %v981 = vshrl.u32 %v980, 7
    %v982 = vsub.s32 %v957, %v981
    %v983 = vrot.slane %v911, %v982
    %v984 = vsel %vm962, %v983, %v979
    %v985 = vlaneseq
    %v986 = vshrl.u32 %v985, 7
    %v987 = vsub.s32 %v964, %v986
    %v988 = vrot.slane %v913, %v987
    %v989 = vsel %vm969, %v988, %v984
    %v990 = vlaneseq
    %v991 = vshrl.u32 %v990, 7
    %v992 = vsub.s32 %v350, %v991
    %v993 = vrot.slane %v915, %v992
    %v994 = vlaneseq
    %v995 = vshrl.u32 %v994, 7
    %v996 = vsub.s32 %v950, %v995
    %v997 = vrot.slane %v917, %v996
    %v998 = vsel %vm955, %v997, %v993
    %v999 = vlaneseq
    %v1000 = vshrl.u32 %v999, 7
    %v1001 = vsub.s32 %v957, %v1000
    %v1002 = vrot.slane %v919, %v1001
    %v1003 = vsel %vm962, %v1002, %v998
    %v1004 = vlaneseq
    %v1005 = vshrl.u32 %v1004, 7
    %v1006 = vsub.s32 %v964, %v1005
    %v1007 = vrot.slane %v921, %v1006
    %v1008 = vsel %vm969, %v1007, %v1003
    %v1009 = vlaneseq
    %v1010 = vshrl.u32 %v1009, 7
    %v1011 = vsub.s32 %v350, %v1010
    %v1012 = vrot.slane %v923, %v1011
    %v1013 = vlaneseq
    %v1014 = vshrl.u32 %v1013, 7
    %v1015 = vsub.s32 %v950, %v1014
    %v1016 = vrot.slane %v925, %v1015
    %v1017 = vsel %vm955, %v1016, %v1012
    %v1018 = vlaneseq
    %v1019 = vshrl.u32 %v1018, 7
    %v1020 = vsub.s32 %v957, %v1019
    %v1021 = vrot.slane %v927, %v1020
    %v1022 = vsel %vm962, %v1021, %v1017
    %v1023 = vlaneseq
    %v1024 = vshrl.u32 %v1023, 7
    %v1025 = vsub.s32 %v964, %v1024
    %v1026 = vrot.slane %v929, %v1025
    %v1027 = vsel %vm969, %v1026, %v1022
    %vm1028 = vcmask 1041409
    %v1029 = vsel %vm1028, %v989, %v970
    %vm1030 = vcmask 1042434
    %v1031 = vsel %vm1030, %v1008, %v1029
    %vm1032 = vcmask 1043459
    %v1033 = vsel %vm1032, %v1027, %v1031
    %vm1035 = vcmask 257024
    %v1036 = vsel %vm1035, %v1033, 0.0
    %1037 = vadd.xlane.f32.xlu0 %v1036
    %v1038 = vpop.xlane.xlu0 %1037
    %v1039 = vadd.f32 %v881, %v1038
    %vm1040 = vcmask 3072
    %1041 = vst.msk [vmem:[#allocation3] sm:$0xf] %vm1040, %v1039
    %v1042 = vld [vmem:[#allocation2] sm:$0xf]
    %v1059 = vlaneseq
    %v1060 = vshrl.u32 %v1059, 7
    %v1061 = vsub.s32 %v350, %v1060
    %v1062 = vrot.slane %v313, %v1061
    %v1063 = vlaneseq
    %v1064 = vshrl.u32 %v1063, 7
    %v1065 = vsub.s32 %v950, %v1064
    %v1066 = vrot.slane %v315, %v1065
    %v1067 = vsel %vm955, %v1066, %v1062
    %v1068 = vlaneseq
    %v1069 = vshrl.u32 %v1068, 7
    %v1070 = vsub.s32 %v957, %v1069
    %v1071 = vrot.slane %v317, %v1070
    %v1072 = vsel %vm962, %v1071, %v1067
    %v1073 = vlaneseq
    %v1074 = vshrl.u32 %v1073, 7
    %v1075 = vsub.s32 %v964, %v1074
    %v1076 = vrot.slane %v319, %v1075
    %v1077 = vsel %vm969, %v1076, %v1072
    %v1078 = vlaneseq
    %v1079 = vshrl.u32 %v1078, 7
    %v1080 = vsub.s32 %v350, %v1079
    %v1081 = vrot.slane %v321, %v1080
    %v1082 = vlaneseq
    %v1083 = vshrl.u32 %v1082, 7
    %v1084 = vsub.s32 %v950, %v1083
    %v1085 = vrot.slane %v323, %v1084
    %v1086 = vsel %vm955, %v1085, %v1081
    %v1087 = vlaneseq
    %v1088 = vshrl.u32 %v1087, 7
    %v1089 = vsub.s32 %v957, %v1088
    %v1090 = vrot.slane %v325, %v1089
    %v1091 = vsel %vm962, %v1090, %v1086
    %v1092 = vlaneseq
    %v1093 = vshrl.u32 %v1092, 7
    %v1094 = vsub.s32 %v964, %v1093
    %v1095 = vrot.slane %v327, %v1094
    %v1096 = vsel %vm969, %v1095, %v1091
    %v1097 = vlaneseq
    %v1098 = vshrl.u32 %v1097, 7
    %v1099 = vsub.s32 %v350, %v1098
    %v1100 = vrot.slane %v329, %v1099
    %v1101 = vlaneseq
    %v1102 = vshrl.u32 %v1101, 7
    %v1103 = vsub.s32 %v950, %v1102
    %v1104 = vrot.slane %v331, %v1103
    %v1105 = vsel %vm955, %v1104, %v1100
    %v1106 = vlaneseq
    %v1107 = vshrl.u32 %v1106, 7
    %v1108 = vsub.s32 %v957, %v1107
    %v1109 = vrot.slane %v333, %v1108
    %v1110 = vsel %vm962, %v1109, %v1105
    %v1111 = vlaneseq
    %v1112 = vshrl.u32 %v1111, 7
    %v1113 = vsub.s32 %v964, %v1112
    %v1114 = vrot.slane %v335, %v1113
    %v1115 = vsel %vm969, %v1114, %v1110
    %v1116 = vlaneseq
    %v1117 = vshrl.u32 %v1116, 7
    %v1118 = vsub.s32 %v350, %v1117
    %v1119 = vrot.slane %v337, %v1118
    %v1120 = vlaneseq
    %v1121 = vshrl.u32 %v1120, 7
    %v1122 = vsub.s32 %v950, %v1121
    %v1123 = vrot.slane %v339, %v1122
    %v1124 = vsel %vm955, %v1123, %v1119
    %v1125 = vlaneseq
    %v1126 = vshrl.u32 %v1125, 7
    %v1127 = vsub.s32 %v957, %v1126
    %v1128 = vrot.slane %v341, %v1127
    %v1129 = vsel %vm962, %v1128, %v1124
    %v1130 = vlaneseq
    %v1131 = vshrl.u32 %v1130, 7
    %v1132 = vsub.s32 %v964, %v1131
    %v1133 = vrot.slane %v343, %v1132
    %v1134 = vsel %vm969, %v1133, %v1129
    %v1135 = vsel %vm1028, %v1096, %v1077
    %v1136 = vsel %vm1030, %v1115, %v1135
    %v1137 = vsel %vm1032, %v1134, %v1136
    %v1139 = vsel %vm1035, %v1137, 0.0
    %1140 = vadd.xlane.f32.xlu0 %v1139
    %v1141 = vpop.xlane.xlu0 %1140
    %v1142 = vadd.f32 %v1042, %v1141
    %1143 = vst.msk [vmem:[#allocation2] sm:$0xf] %vm1040, %v1142
    // Predicated region
    $region22: #{_lovasz_forward.3} parent=1 // pred_check
      %p1144 = pneg %p58
    $region23: #{_lovasz_forward.3} parent=1 // pred_check_branch
      %1146 = sbr.rel (%p1144) target = $region25
    $region24: #{_lovasz_forward.3} parent=1 // pred_region
      %v1147 = vld [vmem:[%s2] sm:$0xf]
      %vm1148 = vcmp.gt.f32.partialorder %v1147, 0.0
      %v1149 = vsel %vm1148, 1, 0
      %v1150 = vcvt.s32.f32 %v1149
      %v1151 = vld [vmem:[#allocation3] sm:$0xf]
      %v1152 = vmul.f32 %v1151, %v1150
      %v1153 = vsel %vm1040, %v1152, 0.0
      %1154 = vadd.xlane.f32.xlu0 %v1153
      %v1155 = vpop.xlane.xlu0 %1154
      %v1156 = vrot.slane %v1155, 4
      %v1157 = vadd.f32 %v1155, %v1156
      %v1158 = vrot.slane %v1157, 2
      %v1159 = vadd.f32 %v1157, %v1158
      %v1160 = vrot.slane %v1159, 1
      %v1161 = vadd.f32 %v1159, %v1160
      %s1162 = vtos %v1161
      %v1163 = vsel %vm1040, %v1150, 0.0
      %1164 = vadd.xlane.f32.xlu0 %v1163
      %v1165 = vpop.xlane.xlu0 %1164
      %v1166 = vrot.slane %v1165, 4
      %v1167 = vadd.f32 %v1165, %v1166
      %v1168 = vrot.slane %v1167, 2
      %v1169 = vadd.f32 %v1167, %v1168
      %v1170 = vrot.slane %v1169, 1
      %v1171 = vadd.f32 %v1169, %v1170
      %s1172 = vtos %v1171
      %v1173 = vstv %s1172
      %v1174 = vrcp.pop %v1173
      %s1175 = vtos %v1174
      %s1176 = smul.f32 %s1162, %s1175
      %v1177 = vstv %s1176
      %vm1178 = vcmask 0
      %1179 = vst.msk [vmem:[#allocation4] sm:$0x1] %vm1178, %v1177
    $region25: #{_lovasz_forward.3} parent=1 // pred_fallthru
      _
    // Predicated region
    $region26: #{_lovasz_forward.3} parent=1 // pred_check
      _
    $region27: #{_lovasz_forward.3} parent=1 // pred_check_branch
      %1181 = sbr.rel (0) target = $region29
    $region28: #{_lovasz_forward.3} parent=1 // pred_region
      %s1183 = ssub.s32 16, 16
      %1184 = vsyncadd [#allocation5], %s1183
      %s1186 = sshll.u32 [#allocation4], 4
      %s1187 = int_to_ptr.vmem [resolvable:$true] %s1186
      %1189 = dma.vmem_to_hbm [thread:$0]  %s1187, 16, %s4, [#allocation5]
    $region29: #{_lovasz_forward.3} parent=1 // pred_fallthru
      _
    // Predicated region
    $region30: #{_lovasz_forward.3} parent=1 // pred_check
      _
    $region31: #{_lovasz_forward.3} parent=1 // pred_check_branch
      %1191 = sbr.rel (0) target = $region33
    $region32: #{_lovasz_forward.3} parent=1 // pred_region
      %1192 = dma.done [#allocation5], 16
    $region33: #{_lovasz_forward.3} parent=1 // pred_fallthru
      _
    %1193 = vsyncpa [#allocation5], 1

</llo_original>
